<compile_context>
chip_gen: v7x
topology: tpu7x:2x2x1
jax: 0.10.0
libtpu: 0.0.40
codegen_flags: <defaults>
</compile_context>

<pallas_src>
import math
from typing import NamedTuple

import jax
import jax.numpy as jnp
from jax.experimental import pallas as pl
from jax.experimental.pallas import tpu as pltpu

LANE = 128


def _round_up(x, m):
    return (x + m - 1) // m * m


def _pad2(x, rows, cols):
    if x.shape == (rows, cols):
        return x
    return jnp.pad(x, ((0, rows - x.shape[0]), (0, cols - x.shape[1])))


def _vmem_cap_bytes():
    """Generation-aware VMEM budget: leave headroom for Mosaic internal scratch."""
    phys = 64 << 20  # conservative default (v7x-sized) if the query is unavailable
    try:
        phys = int(pltpu.get_tpu_info().vmem_capacity_bytes)
    except Exception:
        pass
    headroom = max(12 << 20, phys // 8)   # 12 MiB on 64 MiB parts, 16 MiB on 128 MiB parts
    return max(phys - headroom, 32 << 20)


# ----------------------------- kernels ---------------------------------------

def _ebm_kernel(a_ref, c_ref, w1a_ref, w1c_ref, b1_ref, w2_ref, b2_ref, out_ref):
    """Untiled-hidden path: full W1 halves resident in VMEM."""
    # bf16 cast on the VPU (hidden under DMA); activations arrive f32 from HBM.
    a16 = a_ref[...].astype(jnp.bfloat16)
    c16 = c_ref[...].astype(jnp.bfloat16)
    # hidden = ReLU([a, c] @ W1 + b1) -- two bf16 MXU matmuls, f32 accumulation
    h = (jnp.dot(a16, w1a_ref[...], preferred_element_type=jnp.float32)
         + jnp.dot(c16, w1c_ref[...], preferred_element_type=jnp.float32))
    h = jnp.maximum(h + b1_ref[...], 0.0)                        # f32 [tile_b, Dp]
    # energy = hidden @ W2 + b2, with 1/T folded into w2_ref / b2_ref.
    e = jnp.sum(h * w2_ref[...], axis=-1) + b2_ref[0, 0]         # f32 (tile_b,)
    # lane-dense store: batch index lives on the lane dimension of the output tile.
    out_ref[...] = e[None, :].astype(out_ref.dtype)
    # TODO(synk): PyTorch forward logs NaN/Inf via logging.error; no side-effecting
    # logging inside the kernel — caller can check jnp.isnan/isinf on the result.


def _ebm_kernel_hidden_tiled(a_ref, c_ref, w1a_ref, w1c_ref, b1_ref, w2_ref, b2_ref,
                             out_ref):
    """Large-D path: stream W1 column blocks (hidden dim) and accumulate energies."""
    k = pl.program_id(1)

    @pl.when(k == 0)
    def _():
        out_ref[...] = jnp.zeros_like(out_ref)

    a16 = a_ref[...].astype(jnp.bfloat16)
    c16 = c_ref[...].astype(jnp.bfloat16)
    h = (jnp.dot(a16, w1a_ref[...], preferred_element_type=jnp.float32)
         + jnp.dot(c16, w1c_ref[...], preferred_element_type=jnp.float32))
    h = jnp.maximum(h + b1_ref[...], 0.0)                        # f32 [tile_b, tile_h]
    out_ref[...] += jnp.sum(h * w2_ref[...], axis=-1)[None, :]   # partial energies

    @pl.when(k == pl.num_programs(1) - 1)
    def _():
        out_ref[...] += b2_ref[0, 0]                             # b2/T added once


# ----------------------------- param prepacking -------------------------------

class EBMPackedParams(NamedTuple):
    w1a: jax.Array   # bf16 [Dp, Dp]
    w1c: jax.Array   # bf16 [Dp, Dp]
    b1: jax.Array    # f32  [1, Dp]
    w2: jax.Array    # f32  [1, Dp]  (1/T folded in)
    b2: jax.Array    # f32  [1, 1]   (1/T folded in)
    d: int           # original embedding dim


def prepack_ebm_params(params, temperature=0.7):
    """One-time weight layout/dtype plumbing (pad to lane width, bf16 cast, fold 1/T)."""
    w1a, w1c, b1, w2, b2 = params
    D = w1a.shape[0]
    Dp = _round_up(D, LANE)
    inv_t = jnp.float32(1.0 / temperature)
    return EBMPackedParams(
        w1a=_pad2(w1a, Dp, Dp).astype(jnp.bfloat16),
        w1c=_pad2(w1c, Dp, Dp).astype(jnp.bfloat16),
        b1=_pad2(b1.astype(jnp.float32).reshape(1, -1), 1, Dp),
        w2=_pad2(w2.astype(jnp.float32).reshape(-1, 1).T, 1, Dp) * inv_t,
        b2=b2.astype(jnp.float32).reshape(1, 1) * inv_t,
        d=int(D),
    )


# ----------------------------- forward wrapper --------------------------------

def ebm_forward(article_embedding, context_embedding, params, *,
                temperature=0.7, tile_b=None, tile_h=None,
                force_hidden_tiling=False, activation_buffer_count=None):
    """Pallas TPU implementation of EnergyBasedModel.forward. Returns [B] f32.

    `params` may be raw (w1a, w1c, b1, w2, b2) or an EBMPackedParams from
    prepack_ebm_params (preferred — weight padding/casting is then paid once).
    When packed params are passed, `temperature` is ignored (already folded in).
    `activation_buffer_count=3` can help on v5e if DMA is exposed at small Dp.
    """
    packed = (params if isinstance(params, EBMPackedParams)
              else prepack_ebm_params(params, temperature=temperature))
    B, D = article_embedding.shape
    assert context_embedding.shape == (B, D)
    assert D == packed.d
    Dp = packed.w1a.shape[0]

    vmem_cap = _vmem_cap_bytes()
    act_itemsize = jnp.dtype(article_embedding.dtype).itemsize
    act_bufs = 2 if activation_buffer_count is None else int(activation_buffer_count)

    # Large-D path: single-buffered full weights would eat >40% of VMEM -> stream
    # W1 column blocks over an "arbitrary" hidden-dim grid axis instead.
    use_htile = force_hidden_tiling or (2 * Dp * Dp * 2 > 0.4 * vmem_cap)
    if use_htile:
        if tile_h is None:
            tile_h = next(c for c in (512, 384, 256, 128) if c <= Dp and Dp % c == 0)
        assert tile_h % LANE == 0 and Dp % tile_h == 0

    Bp_lane = _round_up(B, LANE)

    def _est_vmem(tb, single_w):
        if use_htile:
            w_bytes = 2 * (2 * Dp * tile_h * 2 + 2 * tile_h * 4)     # streamed blocks, 2-buffered
            h_bytes = tb * tile_h * 4
        else:
            wbuf = 1 if single_w else 2
            w_bytes = wbuf * (2 * Dp * Dp * 2 + 2 * Dp * 4)
            h_bytes = tb * Dp * 4
        act_bytes = act_bufs * 2 * tb * Dp * act_itemsize            # a + c tiles (f32)
        cast_bytes = 2 * tb * Dp * 2                                 # in-kernel bf16 copies
        out_bytes = 2 * tb * 4
        return w_bytes + h_bytes + act_bytes + cast_bytes + out_bytes + (2 << 20)

    def _run(single_w_weights, use_pipeline_modes):
        # tile_b: bigger tiles amortize the ~0.35us/step overhead in the HBM-bound regime;
        # split so the batch grid has >= 2 steps to feed both v7x TensorCores.
        if tile_b is None:
            tb = min(2048 if Dp <= 512 else 512, Bp_lane)
            if Bp_lane // tb < 2 and Bp_lane >= 2 * LANE:
                tb = _round_up((Bp_lane + 1) // 2, LANE)
            while _est_vmem(tb, single_w_weights) > vmem_cap and tb > LANE:
                tb = max(LANE, _round_up(tb // 2, LANE))
        else:
            tb = tile_b
        assert tb % LANE == 0
        Bp = _round_up(B, tb)    # ragged batch zero-padded; padded rows sliced off below
        vmem_limit = int(min(max(_est_vmem(tb, single_w_weights), 4 << 20), vmem_cap))

        # Activations stay in their incoming dtype (f32); no wrapper-side bf16 pass.
        a_p = _pad2(article_embedding, Bp, Dp)
        c_p = _pad2(context_embedding, Bp, Dp)

        a_mode, w_mode = {}, {}
        if use_pipeline_modes:
            if activation_buffer_count is not None:
                a_mode = dict(pipeline_mode=pl.Buffered(int(activation_buffer_count)))
            if single_w_weights and not use_htile:
                # Grid-invariant blocks: one resident copy is enough (saves 2*Dp^2*2 B per half).
                w_mode = dict(pipeline_mode=pl.Buffered(1))

        if use_htile:
            grid = (Bp // tb, Dp // tile_h)
            in_specs = [
                pl.BlockSpec((tb, Dp), lambda i, k: (i, 0), **a_mode),   # article (resident over k)
                pl.BlockSpec((tb, Dp), lambda i, k: (i, 0), **a_mode),   # context (resident over k)
                pl.BlockSpec((Dp, tile_h), lambda i, k: (0, k)),         # W1a column block
                pl.BlockSpec((Dp, tile_h), lambda i, k: (0, k)),         # W1c column block
                pl.BlockSpec((1, tile_h), lambda i, k: (0, k)),          # b1 block
                pl.BlockSpec((1, tile_h), lambda i, k: (0, k)),          # W2 block (1/T folded)
                pl.BlockSpec(memory_space=pltpu.MemorySpace.SMEM),       # b2/T scalar
            ]
            out_specs = pl.BlockSpec((1, tb), lambda i, k: (0, i))       # resident over k
            kernel = _ebm_kernel_hidden_tiled
            dims = ("parallel", "arbitrary")
        else:
            grid = (Bp // tb,)
            in_specs = [
                pl.BlockSpec((tb, Dp), lambda i: (i, 0), **a_mode),      # article tile (f32)
                pl.BlockSpec((tb, Dp), lambda i: (i, 0), **a_mode),      # context tile (f32)
                pl.BlockSpec((Dp, Dp), lambda i: (0, 0), **w_mode),      # W1 article half (invariant)
                pl.BlockSpec((Dp, Dp), lambda i: (0, 0), **w_mode),      # W1 context half (invariant)
                pl.BlockSpec((1, Dp), lambda i: (0, 0), **w_mode),       # b1
                pl.BlockSpec((1, Dp), lambda i: (0, 0), **w_mode),       # W2 row (1/T folded)
                pl.BlockSpec(memory_space=pltpu.MemorySpace.SMEM),       # b2/T scalar
            ]
            out_specs = pl.BlockSpec((1, tb), lambda i: (0, i))          # lane-dense output slab
            kernel = _ebm_kernel
            dims = ("parallel",)

        return pl.pallas_call(
            kernel,
            out_shape=jax.ShapeDtypeStruct((1, Bp), jnp.float32),
            grid_spec=pltpu.PrefetchScalarGridSpec(
                num_scalar_prefetch=0, grid=grid,
                in_specs=in_specs, out_specs=out_specs),
            compiler_params=pltpu.CompilerParams(
                dimension_semantics=dims, vmem_limit_bytes=vmem_limit),
        )(a_p, c_p, packed.w1a, packed.w1c, packed.b1, packed.w2, packed.b2)

    try:
        out = _run(single_w_weights=True, use_pipeline_modes=True)
    except Exception:
        # Fallback if pl.Buffered pipeline modes are rejected by this JAX/Mosaic version.
        out = _run(single_w_weights=False, use_pipeline_modes=False)

    # glue: drop batch padding (padded rows have nonzero garbage energies) and squeeze.
    return out[0, :B]


# ----------------------------- init + reference -------------------------------

def init_ebm_params(key, embedding_dim, gain=0.01):
    """Deterministic xavier_uniform_(gain=0.01) weights, zero biases."""
    D = embedding_dim
    k1, k2 = jax.random.split(key)
    bound1 = gain * math.sqrt(6.0 / (2 * D + D))          # Linear(2D -> D)
    w1 = jax.random.uniform(k1, (2 * D, D), jnp.float32, -bound1, bound1)
    b1 = jnp.zeros((1, D), jnp.float32)
    bound2 = gain * math.sqrt(6.0 / (D + 1))               # Linear(D -> 1)
    w2 = jax.random.uniform(k2, (D, 1), jnp.float32, -bound2, bound2)
    b2 = jnp.zeros((1, 1), jnp.float32)
    w1a, w1c = w1[:D, :], w1[D:, :]                        # split: concat -> two matmuls
    return (w1a, w1c, b1, w2, b2)


def ebm_reference(article, context, params, temperature=0.7):
    """Pure-JAX reference with the same bf16 rounding / f32 accumulation as the kernel."""
    w1a, w1c, b1, w2, b2 = params
    f = lambda x: x.astype(jnp.bfloat16).astype(jnp.float32)
    h = jnp.maximum(f(article) @ f(w1a) + f(context) @ f(w1c) + b1.reshape(1, -1), 0.0)
    return ((h @ w2.reshape(-1, 1) + b2.reshape(1, 1)) / temperature)[:, 0]


if __name__ == "__main__":
    key = jax.random.PRNGKey(0)
    k_a, k_c, k_p, k2_a, k2_c, k2_p = jax.random.split(key, 6)

    # --- test 1: small shape, weights-resident (untiled) path ---
    B, D = 8, 32
    article = jax.random.normal(k_a, (B, D), jnp.float32)
    context = jax.random.normal(k_c, (B, D), jnp.float32)
    params = init_ebm_params(k_p, D)
    packed = prepack_ebm_params(params, temperature=0.7)     # one-time weight prepack

    energy = ebm_forward(article, context, packed)
    jax.block_until_ready(energy)
    e_ref = ebm_reference(article, context, params, 0.7)
    assert energy.shape == (B,)
    assert jnp.allclose(energy, e_ref, atol=1e-5, rtol=1e-3), (
        f"untiled max abs err {jnp.max(jnp.abs(energy - e_ref))}")

    # --- test 2: hidden-dim-tiled (large-D streaming) path, forced at a small shape ---
    B2, D2 = 16, 256
    article2 = jax.random.normal(k2_a, (B2, D2), jnp.float32)
    context2 = jax.random.normal(k2_c, (B2, D2), jnp.float32)
    params2 = init_ebm_params(k2_p, D2)
    packed2 = prepack_ebm_params(params2, temperature=0.7)
    energy2 = ebm_forward(article2, context2, packed2,
                          force_hidden_tiling=True, tile_h=128)   # 2 accumulation steps
    jax.block_until_ready(energy2)
    e_ref2 = ebm_reference(article2, context2, params2, 0.7)
    assert energy2.shape == (B2,)
    assert jnp.allclose(energy2, e_ref2, atol=1e-5, rtol=1e-3), (
        f"htiled max abs err {jnp.max(jnp.abs(energy2 - e_ref2))}")

    print("KERNEL_OK")
</pallas_src>

<mosaic_0001>
module attributes {stable_mosaic.version = 11 : i64} {
  func.func @_ebm_kernel(%arg0: i32, %arg1: memref<128x128xf32, #tpu.memory_space<vmem>>, %arg2: memref<128x128xf32, #tpu.memory_space<vmem>>, %arg3: memref<128x128xbf16, #tpu.memory_space<vmem>>, %arg4: memref<128x128xbf16, #tpu.memory_space<vmem>>, %arg5: memref<1x128xf32, #tpu.memory_space<vmem>>, %arg6: memref<1x128xf32, #tpu.memory_space<vmem>>, %arg7: memref<1x1xf32, #tpu.memory_space<smem>>, %arg8: memref<1x128xf32, #tpu.memory_space<vmem>>) attributes {dimension_semantics = [#tpu.dimension_semantics<parallel>], iteration_bounds = array<i64: 1>, scalar_prefetch = 0 : i64, scratch_operands = 0 : i64, tpu.core_type = #tpu.core_type<tc>, window_params = [{transform_indices = @transform_0, window_bounds = array<i64: 128, 128>}, {transform_indices = @transform_1, window_bounds = array<i64: 128, 128>}, {pipeline_mode = #tpu.pipeline_mode<synchronous>, transform_indices = @transform_2, window_bounds = array<i64: 128, 128>}, {pipeline_mode = #tpu.pipeline_mode<synchronous>, transform_indices = @transform_3, window_bounds = array<i64: 128, 128>}, {pipeline_mode = #tpu.pipeline_mode<synchronous>, transform_indices = @transform_4, window_bounds = array<i64: 1, 128>}, {pipeline_mode = #tpu.pipeline_mode<synchronous>, transform_indices = @transform_5, window_bounds = array<i64: 1, 128>}, {transform_indices = @transform_6, window_bounds = array<i64: 1, 1>}, {transform_indices = @transform_7, window_bounds = array<i64: 1, 128>}]} {
    %c0 = arith.constant 0 : index
    %c0_0 = arith.constant 0 : index
    %0 = vector.load %arg1[%c0, %c0_0] : memref<128x128xf32, #tpu.memory_space<vmem>>, vector<128x128xf32>
    %1 = arith.truncf %0 : vector<128x128xf32> to vector<128x128xbf16>
    %c0_1 = arith.constant 0 : index
    %c0_2 = arith.constant 0 : index
    %2 = vector.load %arg2[%c0_1, %c0_2] : memref<128x128xf32, #tpu.memory_space<vmem>>, vector<128x128xf32>
    %3 = arith.truncf %2 : vector<128x128xf32> to vector<128x128xbf16>
    %c0_3 = arith.constant 0 : index
    %c0_4 = arith.constant 0 : index
    %4 = vector.load %arg3[%c0_3, %c0_4] : memref<128x128xbf16, #tpu.memory_space<vmem>>, vector<128x128xbf16>
    %cst = arith.constant dense<0.000000e+00> : vector<128x128xf32>
    %5 = tpu.matmul %1, %4, %cst {dimension_numbers = #tpu.dot_dimension_numbers<[1], [0], [0], [1], [0, 0, 1, 1], [], []>} : vector<128x128xbf16>, vector<128x128xbf16>, vector<128x128xf32> -> vector<128x128xf32>
    %c0_5 = arith.constant 0 : index
    %c0_6 = arith.constant 0 : index
    %6 = vector.load %arg4[%c0_5, %c0_6] : memref<128x128xbf16, #tpu.memory_space<vmem>>, vector<128x128xbf16>
    %cst_7 = arith.constant dense<0.000000e+00> : vector<128x128xf32>
    %7 = tpu.matmul %3, %6, %cst_7 {dimension_numbers = #tpu.dot_dimension_numbers<[1], [0], [0], [1], [0, 0, 1, 1], [], []>} : vector<128x128xbf16>, vector<128x128xbf16>, vector<128x128xf32> -> vector<128x128xf32>
    %8 = arith.addf %5, %7 : vector<128x128xf32>
    %c0_8 = arith.constant 0 : index
    %c0_9 = arith.constant 0 : index
    %9 = vector.load %arg5[%c0_8, %c0_9] : memref<1x128xf32, #tpu.memory_space<vmem>>, vector<1x128xf32>
    %10 = vector.broadcast %9 : vector<1x128xf32> to vector<128x128xf32>
    %11 = arith.addf %8, %10 : vector<128x128xf32>
    %cst_10 = arith.constant 0.000000e+00 : f32
    %12 = vector.broadcast %cst_10 : f32 to vector<128x128xf32>
    %13 = arith.maximumf %11, %12 : vector<128x128xf32>
    %c0_11 = arith.constant 0 : index
    %c0_12 = arith.constant 0 : index
    %14 = vector.load %arg6[%c0_11, %c0_12] : memref<1x128xf32, #tpu.memory_space<vmem>>, vector<1x128xf32>
    %15 = vector.broadcast %14 : vector<1x128xf32> to vector<128x128xf32>
    %16 = arith.mulf %13, %15 : vector<128x128xf32>
    %cst_13 = arith.constant dense<0.000000e+00> : vector<128xf32>
    %17 = vector.multi_reduction <add>, %16, %cst_13 [1] : vector<128x128xf32> to vector<128xf32>
    %c0_14 = arith.constant 0 : index
    %c0_15 = arith.constant 0 : index
    %18 = memref.load %arg7[%c0_14, %c0_15] : memref<1x1xf32, #tpu.memory_space<smem>>
    %19 = vector.broadcast %18 : f32 to vector<128xf32>
    %20 = arith.addf %17, %19 : vector<128xf32>
    %21 = vector.shape_cast %20 : vector<128xf32> to vector<1x128xf32>
    %c0_16 = arith.constant 0 : index
    %c0_17 = arith.constant 0 : index
    %22 = vector.load %arg8[%c0_16, %c0_17] : memref<1x128xf32, #tpu.memory_space<vmem>>, vector<1x128xf32>
    tpu.vector_store %arg8[%c0_16, %c0_17], %21 {strides = array<i32>} : memref<1x128xf32, #tpu.memory_space<vmem>>, vector<1x128xf32>,
    return
  }
  func.func @transform_0(%arg0: i32) -> (i32, i32) {
    %c0_i32 = arith.constant 0 : i32
    %c0_i32_0 = arith.constant 0 : i32
    return %arg0, %c0_i32 : i32, i32
  }
  func.func @transform_1(%arg0: i32) -> (i32, i32) {
    %c0_i32 = arith.constant 0 : i32
    %c0_i32_0 = arith.constant 0 : i32
    return %arg0, %c0_i32 : i32, i32
  }
  func.func @transform_2(%arg0: i32) -> (i32, i32) {
    %c0_i32 = arith.constant 0 : i32
    %c0_i32_0 = arith.constant 0 : i32
    %c0_i32_1 = arith.constant 0 : i32
    return %c0_i32, %c0_i32_0 : i32, i32
  }
  func.func @transform_3(%arg0: i32) -> (i32, i32) {
    %c0_i32 = arith.constant 0 : i32
    %c0_i32_0 = arith.constant 0 : i32
    %c0_i32_1 = arith.constant 0 : i32
    return %c0_i32, %c0_i32_0 : i32, i32
  }
  func.func @transform_4(%arg0: i32) -> (i32, i32) {
    %c0_i32 = arith.constant 0 : i32
    %c0_i32_0 = arith.constant 0 : i32
    %c0_i32_1 = arith.constant 0 : i32
    return %c0_i32, %c0_i32_0 : i32, i32
  }
  func.func @transform_5(%arg0: i32) -> (i32, i32) {
    %c0_i32 = arith.constant 0 : i32
    %c0_i32_0 = arith.constant 0 : i32
    %c0_i32_1 = arith.constant 0 : i32
    return %c0_i32, %c0_i32_0 : i32, i32
  }
  func.func @transform_6(%arg0: i32) -> (i32, i32) {
    %c0_i32 = arith.constant 0 : i32
    %c0_i32_0 = arith.constant 0 : i32
    %c0_i32_1 = arith.constant 0 : i32
    return %c0_i32, %c0_i32_0 : i32, i32
  }
  func.func @transform_7(%arg0: i32) -> (i32, i32) {
    %c0_i32 = arith.constant 0 : i32
    %c0_i32_0 = arith.constant 0 : i32
    return %c0_i32, %arg0 : i32, i32
  }
}

module attributes {stable_mosaic.version = 11 : i64} {
  func.func @_ebm_kernel(%arg0: i32, %arg1: memref<128x128xf32, #tpu.memory_space<vmem>>, %arg2: memref<128x128xf32, #tpu.memory_space<vmem>>, %arg3: memref<128x128xbf16, #tpu.memory_space<vmem>>, %arg4: memref<128x128xbf16, #tpu.memory_space<vmem>>, %arg5: memref<1x128xf32, #tpu.memory_space<vmem>>, %arg6: memref<1x128xf32, #tpu.memory_space<vmem>>, %arg7: memref<1x1xf32, #tpu.memory_space<smem>>, %arg8: memref<1x128xf32, #tpu.memory_space<vmem>>) attributes {dimension_semantics = [#tpu.dimension_semantics<parallel>], iteration_bounds = array<i64: 1>, scalar_prefetch = 0 : i64, scratch_operands = 0 : i64, tpu.core_type = #tpu.core_type<tc>, window_params = [{transform_indices = @transform_0, window_bounds = array<i64: 128, 128>}, {transform_indices = @transform_1, window_bounds = array<i64: 128, 128>}, {pipeline_mode = #tpu.pipeline_mode<synchronous>, transform_indices = @transform_2, window_bounds = array<i64: 128, 128>}, {pipeline_mode = #tpu.pipeline_mode<synchronous>, transform_indices = @transform_3, window_bounds = array<i64: 128, 128>}, {pipeline_mode = #tpu.pipeline_mode<synchronous>, transform_indices = @transform_4, window_bounds = array<i64: 1, 128>}, {pipeline_mode = #tpu.pipeline_mode<synchronous>, transform_indices = @transform_5, window_bounds = array<i64: 1, 128>}, {transform_indices = @transform_6, window_bounds = array<i64: 1, 1>}, {transform_indices = @transform_7, window_bounds = array<i64: 1, 128>}]} {
    %c0 = arith.constant 0 : index
    %c0_0 = arith.constant 0 : index
    %0 = vector.load %arg1[%c0, %c0_0] : memref<128x128xf32, #tpu.memory_space<vmem>>, vector<128x128xf32>
    %1 = arith.truncf %0 : vector<128x128xf32> to vector<128x128xbf16>
    %c0_1 = arith.constant 0 : index
    %c0_2 = arith.constant 0 : index
    %2 = vector.load %arg2[%c0_1, %c0_2] : memref<128x128xf32, #tpu.memory_space<vmem>>, vector<128x128xf32>
    %3 = arith.truncf %2 : vector<128x128xf32> to vector<128x128xbf16>
    %c0_3 = arith.constant 0 : index
    %c0_4 = arith.constant 0 : index
    %4 = vector.load %arg3[%c0_3, %c0_4] : memref<128x128xbf16, #tpu.memory_space<vmem>>, vector<128x128xbf16>
    %cst = arith.constant dense<0.000000e+00> : vector<128x128xf32>
    %5 = tpu.matmul %1, %4, %cst {dimension_numbers = #tpu.dot_dimension_numbers<[1], [0], [0], [1], [0, 0, 1, 1], [], []>} : vector<128x128xbf16>, vector<128x128xbf16>, vector<128x128xf32> -> vector<128x128xf32>
    %c0_5 = arith.constant 0 : index
    %c0_6 = arith.constant 0 : index
    %6 = vector.load %arg4[%c0_5, %c0_6] : memref<128x128xbf16, #tpu.memory_space<vmem>>, vector<128x128xbf16>
    %cst_7 = arith.constant dense<0.000000e+00> : vector<128x128xf32>
    %7 = tpu.matmul %3, %6, %cst_7 {dimension_numbers = #tpu.dot_dimension_numbers<[1], [0], [0], [1], [0, 0, 1, 1], [], []>} : vector<128x128xbf16>, vector<128x128xbf16>, vector<128x128xf32> -> vector<128x128xf32>
    %8 = arith.addf %5, %7 : vector<128x128xf32>
    %c0_8 = arith.constant 0 : index
    %c0_9 = arith.constant 0 : index
    %9 = vector.load %arg5[%c0_8, %c0_9] : memref<1x128xf32, #tpu.memory_space<vmem>>, vector<1x128xf32>
    %10 = vector.broadcast %9 : vector<1x128xf32> to vector<128x128xf32>
    %11 = arith.addf %8, %10 : vector<128x128xf32>
    %cst_10 = arith.constant 0.000000e+00 : f32
    %12 = vector.broadcast %cst_10 : f32 to vector<128x128xf32>
    %13 = arith.maximumf %11, %12 : vector<128x128xf32>
    %c0_11 = arith.constant 0 : index
    %c0_12 = arith.constant 0 : index
    %14 = vector.load %arg6[%c0_11, %c0_12] : memref<1x128xf32, #tpu.memory_space<vmem>>, vector<1x128xf32>
    %15 = vector.broadcast %14 : vector<1x128xf32> to vector<128x128xf32>
    %16 = arith.mulf %13, %15 : vector<128x128xf32>
    %cst_13 = arith.constant dense<0.000000e+00> : vector<128xf32>
    %17 = vector.multi_reduction <add>, %16, %cst_13 [1] : vector<128x128xf32> to vector<128xf32>
    %c0_14 = arith.constant 0 : index
    %c0_15 = arith.constant 0 : index
    %18 = memref.load %arg7[%c0_14, %c0_15] : memref<1x1xf32, #tpu.memory_space<smem>>
    %19 = vector.broadcast %18 : f32 to vector<128xf32>
    %20 = arith.addf %17, %19 : vector<128xf32>
    %21 = vector.shape_cast %20 : vector<128xf32> to vector<1x128xf32>
    %c0_16 = arith.constant 0 : index
    %c0_17 = arith.constant 0 : index
    %22 = vector.load %arg8[%c0_16, %c0_17] : memref<1x128xf32, #tpu.memory_space<vmem>>, vector<1x128xf32>
    tpu.vector_store %arg8[%c0_16, %c0_17], %21 {strides = array<i32>} : memref<1x128xf32, #tpu.memory_space<vmem>>, vector<1x128xf32>,
    return
  }
  func.func @transform_0(%arg0: i32) -> (i32, i32) {
    %c0_i32 = arith.constant 0 : i32
    %c0_i32_0 = arith.constant 0 : i32
    return %arg0, %c0_i32 : i32, i32
  }
  func.func @transform_1(%arg0: i32) -> (i32, i32) {
    %c0_i32 = arith.constant 0 : i32
    %c0_i32_0 = arith.constant 0 : i32
    return %arg0, %c0_i32 : i32, i32
  }
  func.func @transform_2(%arg0: i32) -> (i32, i32) {
    %c0_i32 = arith.constant 0 : i32
    %c0_i32_0 = arith.constant 0 : i32
    %c0_i32_1 = arith.constant 0 : i32
    return %c0_i32, %c0_i32_0 : i32, i32
  }
  func.func @transform_3(%arg0: i32) -> (i32, i32) {
    %c0_i32 = arith.constant 0 : i32
    %c0_i32_0 = arith.constant 0 : i32
    %c0_i32_1 = arith.constant 0 : i32
    return %c0_i32, %c0_i32_0 : i32, i32
  }
  func.func @transform_4(%arg0: i32) -> (i32, i32) {
    %c0_i32 = arith.constant 0 : i32
    %c0_i32_0 = arith.constant 0 : i32
    %c0_i32_1 = arith.constant 0 : i32
    return %c0_i32, %c0_i32_0 : i32, i32
  }
  func.func @transform_5(%arg0: i32) -> (i32, i32) {
    %c0_i32 = arith.constant 0 : i32
    %c0_i32_0 = arith.constant 0 : i32
    %c0_i32_1 = arith.constant 0 : i32
    return %c0_i32, %c0_i32_0 : i32, i32
  }
  func.func @transform_6(%arg0: i32) -> (i32, i32) {
    %c0_i32 = arith.constant 0 : i32
    %c0_i32_0 = arith.constant 0 : i32
    %c0_i32_1 = arith.constant 0 : i32
    return %c0_i32, %c0_i32_0 : i32, i32
  }
  func.func @transform_7(%arg0: i32) -> (i32, i32) {
    %c0_i32 = arith.constant 0 : i32
    %c0_i32_0 = arith.constant 0 : i32
    return %c0_i32, %arg0 : i32, i32
  }
}

</mosaic_0001>

<llo_original>
// kernel: tpu_custom_call.1
$region0: #{tpu_custom_call.1}
  #allocation0 [shape = 'u32[]', space=smem, size = 0x4, offset = 0x4, fixed_abs, tag = 'smem constant byte address 0x4 - core index']
  #allocation1 [shape = 'u32[144,128]{1,0:T(1,128)}', space=vmem, size = 0x12000, scoped, tag = 'internal scratch']
  #allocation2 [shape = 'f32[1,1]{1,0:T(1,128)S(6)}', space=smem, size = 0x200, scoped, tag = 'scoped memory for tpu_custom_call.1']
  %s0 = inlined_call_operand.hbm [shape: f32[128,128], index: 0, kind: input, shape index: {}]
  %s1 = inlined_call_operand.hbm [shape: f32[128,128], index: 1, kind: input, shape index: {}]
  %s2 = inlined_call_operand.hbm [shape: bf16[128,128], index: 2, kind: input, shape index: {}]
  %s3 = inlined_call_operand.hbm [shape: bf16[128,128], index: 3, kind: input, shape index: {}]
  %s4 = inlined_call_operand.vmem [shape: f32[1,128], index: 4, kind: input, shape index: {}]
  %s5 = inlined_call_operand.vmem [shape: f32[1,128], index: 5, kind: input, shape index: {}]
  %s6 = inlined_call_operand.<no memory space> [shape: f32[1,1], index: 6, kind: input, shape index: {}]
  %s7 = inlined_call_operand.hbm [shape: f32[1,128], index: 7, kind: output, shape index: {}]
  %s8 = sld [smem:[#allocation0]]
  $region54: #{tpu_custom_call.1} parent=0
    _
  %s10 = ssub.s32 1, %s8
  %s11 = scalar_select 0, %s10, %s8
  %12 = sst [smem:[#allocation2]] %s6
  $region1: #{tpu_custom_call.1} parent=0
    #allocation3 [shape = 'u8[65536]{0}', space=vmem, size = 0x10000, scoped, tag = 'input window, operand 0, single buffered']
    #allocation4 [shape = 's32[1]{0}', space=sflag, size = 0x4, scoped, tag = 'scoped memory for tpu_custom_call.1']
    #allocation5 [shape = 's32[1]{0}', space=sflag, size = 0x4, scoped, tag = 'scoped memory for tpu_custom_call.1']
    #allocation6 [shape = 'u8[65536]{0}', space=vmem, size = 0x10000, scoped, tag = 'input window, operand 1, single buffered']
    #allocation7 [shape = 's32[1]{0}', space=sflag, size = 0x4, scoped, tag = 'scoped memory for tpu_custom_call.1']
    #allocation8 [shape = 'u8[32768]{0}', space=vmem, size = 0x8000, scoped, tag = 'input window, operand 2, single buffered']
    #allocation9 [shape = 'u8[32768]{0}', space=vmem, size = 0x8000, scoped, tag = 'input window, operand 3, single buffered']
    #allocation10 [shape = 's32[1]{0}', space=sflag, size = 0x4, scoped, tag = 'scoped memory for tpu_custom_call.1']
    #allocation11 [shape = 'u8[512]{0}', space=vmem, size = 0x400, scoped, tag = 'output window, operand 0, single buffered']
    %13 = vsyncpa [#allocation4], 0
    %14 = vsyncpa [#allocation7], 0
    %15 = vsyncpa [#allocation10], 0
    %16 = vsyncpa [#allocation5], 0
    // Predicated region
    $region2: #{tpu_custom_call.1} parent=1 // pred_check
      _
    $region3: #{tpu_custom_call.1} parent=1 // pred_check_branch
      %18 = sbr.rel (0) target = $region5
    $region4: #{tpu_custom_call.1} parent=1 // pred_region
      %s20 = ssub.s32 2048, 2048
      %21 = vsyncadd [#allocation4], %s20
      %s22 = sshll.u32 [#allocation3], 4
      %s23 = int_to_ptr.vmem [resolvable:$true] %s22
      %28 = dma.hbm_to_vmem [thread:$0]  %s0, 2048, %s23, [#allocation4], 128, 128, 8
    $region5: #{tpu_custom_call.1} parent=1 // pred_fallthru
      _
    // Predicated region
    $region6: #{tpu_custom_call.1} parent=1 // pred_check
      _
    $region7: #{tpu_custom_call.1} parent=1 // pred_check_branch
      %30 = sbr.rel (0) target = $region9
    $region8: #{tpu_custom_call.1} parent=1 // pred_region
      %s32 = ssub.s32 2048, 2048
      %33 = vsyncadd [#allocation7], %s32
      %s34 = sshll.u32 [#allocation6], 4
      %s35 = int_to_ptr.vmem [resolvable:$true] %s34
      %40 = dma.hbm_to_vmem [thread:$0]  %s1, 2048, %s35, [#allocation7], 128, 128, 8
    $region9: #{tpu_custom_call.1} parent=1 // pred_fallthru
      _
    // Predicated region
    $region10: #{tpu_custom_call.1} parent=1 // pred_check
      _
    $region11: #{tpu_custom_call.1} parent=1 // pred_check_branch
      %42 = sbr.rel (0) target = $region13
    $region12: #{tpu_custom_call.1} parent=1 // pred_region
      %s44 = ssub.s32 1024, 1024
      %45 = vsyncadd [#allocation7], %s44
      %s46 = sshll.u32 [#allocation8], 4
      %s47 = int_to_ptr.vmem [resolvable:$true] %s46
      %52 = dma.hbm_to_vmem [thread:$0]  %s2, 1024, %s47, [#allocation7], 64, 64, 4
    $region13: #{tpu_custom_call.1} parent=1 // pred_fallthru
      _
    // Predicated region
    $region14: #{tpu_custom_call.1} parent=1 // pred_check
      _
    $region15: #{tpu_custom_call.1} parent=1 // pred_check_branch
      %54 = sbr.rel (0) target = $region17
    $region16: #{tpu_custom_call.1} parent=1 // pred_region
      %s56 = ssub.s32 1024, 1024
      %57 = vsyncadd [#allocation10], %s56
      %s58 = sshll.u32 [#allocation9], 4
      %s59 = int_to_ptr.vmem [resolvable:$true] %s58
      %64 = dma.hbm_to_vmem [thread:$0]  %s3, 1024, %s59, [#allocation10], 64, 64, 4
    $region17: #{tpu_custom_call.1} parent=1 // pred_fallthru
      _
    // Predicated region
    $region18: #{tpu_custom_call.1} parent=1 // pred_check
      _
    $region19: #{tpu_custom_call.1} parent=1 // pred_check_branch
      %66 = sbr.rel (0) target = $region21
    $region20: #{tpu_custom_call.1} parent=1 // pred_region
      _
    $region21: #{tpu_custom_call.1} parent=1 // pred_fallthru
      _
    // Predicated region
    $region22: #{tpu_custom_call.1} parent=1 // pred_check
      _
    $region23: #{tpu_custom_call.1} parent=1 // pred_check_branch
      %68 = sbr.rel (0) target = $region25
    $region24: #{tpu_custom_call.1} parent=1 // pred_region
      _
    $region25: #{tpu_custom_call.1} parent=1 // pred_fallthru
      _
    // Predicated region
    $region26: #{tpu_custom_call.1} parent=1 // pred_check
      _
    $region27: #{tpu_custom_call.1} parent=1 // pred_check_branch
      %70 = sbr.rel (0) target = $region29
    $region28: #{tpu_custom_call.1} parent=1 // pred_region
      _
    $region29: #{tpu_custom_call.1} parent=1 // pred_fallthru
      _
    // Predicated region
    $region30: #{tpu_custom_call.1} parent=1 // pred_check
      _
    $region31: #{tpu_custom_call.1} parent=1 // pred_check_branch
      %72 = sbr.rel (0) target = $region33
    $region32: #{tpu_custom_call.1} parent=1 // pred_region
      %73 = dma.done [#allocation4], 2048
    $region33: #{tpu_custom_call.1} parent=1 // pred_fallthru
      _
    // Predicated region
    $region34: #{tpu_custom_call.1} parent=1 // pred_check
      _
    $region35: #{tpu_custom_call.1} parent=1 // pred_check_branch
      %75 = sbr.rel (0) target = $region37
    $region36: #{tpu_custom_call.1} parent=1 // pred_region
      %76 = dma.done [#allocation7], 2048
    $region37: #{tpu_custom_call.1} parent=1 // pred_fallthru
      _
    // Predicated region
    $region38: #{tpu_custom_call.1} parent=1 // pred_check
      _
    $region39: #{tpu_custom_call.1} parent=1 // pred_check_branch
      %78 = sbr.rel (0) target = $region41
    $region40: #{tpu_custom_call.1} parent=1 // pred_region
      %79 = dma.done [#allocation7], 1024
    $region41: #{tpu_custom_call.1} parent=1 // pred_fallthru
      _
    // Predicated region
    $region42: #{tpu_custom_call.1} parent=1 // pred_check
      _
    $region43: #{tpu_custom_call.1} parent=1 // pred_check_branch
      %81 = sbr.rel (0) target = $region45
    $region44: #{tpu_custom_call.1} parent=1 // pred_region
      %82 = dma.done [#allocation10], 1024
    $region45: #{tpu_custom_call.1} parent=1 // pred_fallthru
      _
    %v84 = vld [vmem:[#allocation3] sm:$0xff]
    %v85 = vld [vmem:[#allocation3 + $0x8] sm:$0xff]
    %v86 = vld [vmem:[#allocation3 + $0x10] sm:$0xff]
    %v87 = vld [vmem:[#allocation3 + $0x18] sm:$0xff]
    %v88 = vld [vmem:[#allocation3 + $0x20] sm:$0xff]
    %v89 = vld [vmem:[#allocation3 + $0x28] sm:$0xff]
    %v90 = vld [vmem:[#allocation3 + $0x30] sm:$0xff]
    %v91 = vld [vmem:[#allocation3 + $0x38] sm:$0xff]
    %v92 = vld [vmem:[#allocation3 + $0x40] sm:$0xff]
    %v93 = vld [vmem:[#allocation3 + $0x48] sm:$0xff]
    %v94 = vld [vmem:[#allocation3 + $0x50] sm:$0xff]
    %v95 = vld [vmem:[#allocation3 + $0x58] sm:$0xff]
    %v96 = vld [vmem:[#allocation3 + $0x60] sm:$0xff]
    %v97 = vld [vmem:[#allocation3 + $0x68] sm:$0xff]
    %v98 = vld [vmem:[#allocation3 + $0x70] sm:$0xff]
    %v99 = vld [vmem:[#allocation3 + $0x78] sm:$0xff]
    %v100 = vpack.c.bf16 %v85, %v84
    %v101 = vpack.c.bf16 %v87, %v86
    %v102 = vpack.c.bf16 %v89, %v88
    %v103 = vpack.c.bf16 %v91, %v90
    %v104 = vpack.c.bf16 %v93, %v92
    %v105 = vpack.c.bf16 %v95, %v94
    %v106 = vpack.c.bf16 %v97, %v96
    %v107 = vpack.c.bf16 %v99, %v98
    %v108 = vld [vmem:[#allocation6] sm:$0xff]
    %v109 = vld [vmem:[#allocation6 + $0x8] sm:$0xff]
    %v110 = vld [vmem:[#allocation6 + $0x10] sm:$0xff]
    %v111 = vld [vmem:[#allocation6 + $0x18] sm:$0xff]
    %v112 = vld [vmem:[#allocation6 + $0x20] sm:$0xff]
    %v113 = vld [vmem:[#allocation6 + $0x28] sm:$0xff]
    %v114 = vld [vmem:[#allocation6 + $0x30] sm:$0xff]
    %v115 = vld [vmem:[#allocation6 + $0x38] sm:$0xff]
    %v116 = vld [vmem:[#allocation6 + $0x40] sm:$0xff]
    %v117 = vld [vmem:[#allocation6 + $0x48] sm:$0xff]
    %v118 = vld [vmem:[#allocation6 + $0x50] sm:$0xff]
    %v119 = vld [vmem:[#allocation6 + $0x58] sm:$0xff]
    %v120 = vld [vmem:[#allocation6 + $0x60] sm:$0xff]
    %v121 = vld [vmem:[#allocation6 + $0x68] sm:$0xff]
    %v122 = vld [vmem:[#allocation6 + $0x70] sm:$0xff]
    %v123 = vld [vmem:[#allocation6 + $0x78] sm:$0xff]
    %v124 = vpack.c.bf16 %v109, %v108
    %v125 = vpack.c.bf16 %v111, %v110
    %v126 = vpack.c.bf16 %v113, %v112
    %v127 = vpack.c.bf16 %v115, %v114
    %v128 = vpack.c.bf16 %v117, %v116
    %v129 = vpack.c.bf16 %v119, %v118
    %v130 = vpack.c.bf16 %v121, %v120
    %v131 = vpack.c.bf16 %v123, %v122
    %v132 = vld [vmem:[#allocation8] sm:$0xf]
    %v133 = vld [vmem:[#allocation8 + $0x4] sm:$0xf]
    %v134 = vld [vmem:[#allocation8 + $0x8] sm:$0xf]
    %v135 = vld [vmem:[#allocation8 + $0xc] sm:$0xf]
    %v136 = vld [vmem:[#allocation8 + $0x10] sm:$0xf]
    %v137 = vld [vmem:[#allocation8 + $0x14] sm:$0xf]
    %v138 = vld [vmem:[#allocation8 + $0x18] sm:$0xf]
    %v139 = vld [vmem:[#allocation8 + $0x1c] sm:$0xf]
    %v140 = vld [vmem:[#allocation8 + $0x20] sm:$0xf]
    %v141 = vld [vmem:[#allocation8 + $0x24] sm:$0xf]
    %v142 = vld [vmem:[#allocation8 + $0x28] sm:$0xf]
    %v143 = vld [vmem:[#allocation8 + $0x2c] sm:$0xf]
    %v144 = vld [vmem:[#allocation8 + $0x30] sm:$0xf]
    %v145 = vld [vmem:[#allocation8 + $0x34] sm:$0xf]
    %v146 = vld [vmem:[#allocation8 + $0x38] sm:$0xf]
    %v147 = vld [vmem:[#allocation8 + $0x3c] sm:$0xf]
    %v148 = vld [vmem:[#allocation9] sm:$0xf]
    %v149 = vld [vmem:[#allocation9 + $0x4] sm:$0xf]
    %v150 = vld [vmem:[#allocation9 + $0x8] sm:$0xf]
    %v151 = vld [vmem:[#allocation9 + $0xc] sm:$0xf]
    %v152 = vld [vmem:[#allocation9 + $0x10] sm:$0xf]
    %v153 = vld [vmem:[#allocation9 + $0x14] sm:$0xf]
    %v154 = vld [vmem:[#allocation9 + $0x18] sm:$0xf]
    %v155 = vld [vmem:[#allocation9 + $0x1c] sm:$0xf]
    %v156 = vld [vmem:[#allocation9 + $0x20] sm:$0xf]
    %v157 = vld [vmem:[#allocation9 + $0x24] sm:$0xf]
    %v158 = vld [vmem:[#allocation9 + $0x28] sm:$0xf]
    %v159 = vld [vmem:[#allocation9 + $0x2c] sm:$0xf]
    %v160 = vld [vmem:[#allocation9 + $0x30] sm:$0xf]
    %v161 = vld [vmem:[#allocation9 + $0x34] sm:$0xf]
    %v162 = vld [vmem:[#allocation9 + $0x38] sm:$0xf]
    %v163 = vld [vmem:[#allocation9 + $0x3c] sm:$0xf]
    %v180 = vunpack.c.l.b16 %v148
    %v181 = vunpack.c.l.b16 %v149
    %v182 = vunpack.c.l.b16 %v150
    %v183 = vunpack.c.l.b16 %v151
    %v184 = vunpack.c.l.b16 %v152
    %v185 = vunpack.c.l.b16 %v153
    %v186 = vunpack.c.l.b16 %v154
    %v187 = vunpack.c.l.b16 %v155
    %v188 = vunpack.c.l.b16 %v156
    %v189 = vunpack.c.l.b16 %v157
    %v190 = vunpack.c.l.b16 %v158
    %v191 = vunpack.c.l.b16 %v159
    %v192 = vunpack.c.l.b16 %v160
    %v193 = vunpack.c.l.b16 %v161
    %v194 = vunpack.c.l.b16 %v162
    %v195 = vunpack.c.l.b16 %v163
    %v196 = vpack.c.b16 %v181, %v180
    %v197 = vpack.c.b16 %v183, %v182
    %v198 = vpack.c.b16 %v185, %v184
    %v199 = vpack.c.b16 %v187, %v186
    %v200 = vpack.c.b16 %v189, %v188
    %v201 = vpack.c.b16 %v191, %v190
    %v202 = vpack.c.b16 %v193, %v192
    %v203 = vpack.c.b16 %v195, %v194
    %212 = vmatprep.subr.bf16.mxu0 0
    %213 = vmatpush1.bf16.msra.mxu0 %v196
    %214 = vmatprep.subr.bf16.mxu0 0
    %215 = vmatpush1.bf16.msra.mxu0 %v197
    %216 = vmatprep.subr.bf16.mxu0 0
    %217 = vmatpush1.bf16.msra.mxu0 %v198
    %218 = vmatprep.subr.bf16.mxu0 0
    %219 = vmatpush1.bf16.msra.mxu0 %v199
    %220 = vmatprep.subr.bf16.mxu0 0
    %221 = vmatpush1.bf16.msra.mxu0 %v200
    %222 = vmatprep.subr.bf16.mxu0 0
    %223 = vmatpush1.bf16.msra.mxu0 %v201
    %224 = vmatprep.subr.bf16.mxu0 0
    %225 = vmatpush1.bf16.msra.mxu0 %v202
    %226 = vmatprep.subr.bf16.mxu0 0
    %227 = vmatpush1.bf16.msra.mxu0 %v203
    %228 = vmatprep.subr.bf16.mxu0 0
    %229 = vmatpush1.bf16.msra.mxu0 0
    %230 = vmatprep.subr.bf16.mxu0 0
    %231 = vmatpush1.bf16.msra.mxu0 0
    %232 = vmatprep.subr.bf16.mxu0 0
    %233 = vmatpush1.bf16.msra.mxu0 0
    %234 = vmatprep.subr.bf16.mxu0 0
    %235 = vmatpush1.bf16.msra.mxu0 0
    %236 = vmatprep.subr.bf16.mxu0 0
    %237 = vmatpush1.bf16.msra.mxu0 0
    %238 = vmatprep.subr.bf16.mxu0 0
    %239 = vmatpush1.bf16.msra.mxu0 0
    %240 = vmatprep.subr.bf16.mxu0 0
    %241 = vmatpush1.bf16.msra.mxu0 0
    %242 = vmatprep.subr.bf16.mxu0 0
    %243 = vmatpush1.bf16.msra.mxu0 0
    %244 = vmatprep.mubr.bf16.mxu0 0
    %245 = vmatmul.mubr.bf16.gmra.mrb[0].mxu0 %v124
    %v246 = vpop.f32.mrb[0].mxu0
    %v247 = vadd.f32 0.0, %v246
    %v248 = vpop.f32.mrb[0].mxu0
    %v249 = vpop.f32.mrb[0].mxu0
    %v250 = vadd.f32 0.0, %v249
    %v251 = vpop.f32.mrb[0].mxu0
    %252 = vmatprep.mubr.bf16.mxu0 0
    %253 = vmatmul.mubr.bf16.gmra.mrb[0].mxu0 %v125
    %v254 = vpop.f32.mrb[0].mxu0
    %v255 = vadd.f32 0.0, %v254
    %v256 = vpop.f32.mrb[0].mxu0
    %v257 = vpop.f32.mrb[0].mxu0
    %v258 = vadd.f32 0.0, %v257
    %v259 = vpop.f32.mrb[0].mxu0
    %260 = vmatprep.mubr.bf16.mxu0 0
    %261 = vmatmul.mubr.bf16.gmra.mrb[0].mxu0 %v126
    %v262 = vpop.f32.mrb[0].mxu0
    %v263 = vadd.f32 0.0, %v262
    %v264 = vpop.f32.mrb[0].mxu0
    %v265 = vpop.f32.mrb[0].mxu0
    %v266 = vadd.f32 0.0, %v265
    %v267 = vpop.f32.mrb[0].mxu0
    %268 = vmatprep.mubr.bf16.mxu0 0
    %269 = vmatmul.mubr.bf16.gmra.mrb[0].mxu0 %v127
    %v270 = vpop.f32.mrb[0].mxu0
    %v271 = vadd.f32 0.0, %v270
    %v272 = vpop.f32.mrb[0].mxu0
    %v273 = vpop.f32.mrb[0].mxu0
    %v274 = vadd.f32 0.0, %v273
    %v275 = vpop.f32.mrb[0].mxu0
    %276 = vmatprep.mubr.bf16.mxu0 0
    %277 = vmatmul.mubr.bf16.gmra.mrb[0].mxu0 %v128
    %v278 = vpop.f32.mrb[0].mxu0
    %v279 = vadd.f32 0.0, %v278
    %v280 = vpop.f32.mrb[0].mxu0
    %v281 = vpop.f32.mrb[0].mxu0
    %v282 = vadd.f32 0.0, %v281
    %v283 = vpop.f32.mrb[0].mxu0
    %284 = vmatprep.mubr.bf16.mxu0 0
    %285 = vmatmul.mubr.bf16.gmra.mrb[0].mxu0 %v129
    %v286 = vpop.f32.mrb[0].mxu0
    %v287 = vadd.f32 0.0, %v286
    %v288 = vpop.f32.mrb[0].mxu0
    %v289 = vpop.f32.mrb[0].mxu0
    %v290 = vadd.f32 0.0, %v289
    %v291 = vpop.f32.mrb[0].mxu0
    %292 = vmatprep.mubr.bf16.mxu0 0
    %293 = vmatmul.mubr.bf16.gmra.mrb[0].mxu0 %v130
    %v294 = vpop.f32.mrb[0].mxu0
    %v295 = vadd.f32 0.0, %v294
    %v296 = vpop.f32.mrb[0].mxu0
    %v297 = vpop.f32.mrb[0].mxu0
    %v298 = vadd.f32 0.0, %v297
    %v299 = vpop.f32.mrb[0].mxu0
    %300 = vmatprep.mubr.bf16.mxu0 0
    %301 = vmatmul.mubr.bf16.gmra.mrb[0].mxu0 %v131
    %v302 = vpop.f32.mrb[0].mxu0
    %v303 = vadd.f32 0.0, %v302
    %v304 = vpop.f32.mrb[0].mxu0
    %v305 = vpop.f32.mrb[0].mxu0
    %v306 = vadd.f32 0.0, %v305
    %v307 = vpop.f32.mrb[0].mxu0
    %308 = vdwg.mxu0
    %v325 = vunpack.c.l.b16 %v132
    %v326 = vunpack.c.l.b16 %v133
    %v327 = vunpack.c.l.b16 %v134
    %v328 = vunpack.c.l.b16 %v135
    %v329 = vunpack.c.l.b16 %v136
    %v330 = vunpack.c.l.b16 %v137
    %v331 = vunpack.c.l.b16 %v138
    %v332 = vunpack.c.l.b16 %v139
    %v333 = vunpack.c.l.b16 %v140
    %v334 = vunpack.c.l.b16 %v141
    %v335 = vunpack.c.l.b16 %v142
    %v336 = vunpack.c.l.b16 %v143
    %v337 = vunpack.c.l.b16 %v144
    %v338 = vunpack.c.l.b16 %v145
    %v339 = vunpack.c.l.b16 %v146
    %v340 = vunpack.c.l.b16 %v147
    %v341 = vpack.c.b16 %v326, %v325
    %v342 = vpack.c.b16 %v328, %v327
    %v343 = vpack.c.b16 %v330, %v329
    %v344 = vpack.c.b16 %v332, %v331
    %v345 = vpack.c.b16 %v334, %v333
    %v346 = vpack.c.b16 %v336, %v335
    %v347 = vpack.c.b16 %v338, %v337
    %v348 = vpack.c.b16 %v340, %v339
    %357 = vmatprep.subr.bf16.mxu0 0
    %358 = vmatpush1.bf16.msra.mxu0 %v341
    %359 = vmatprep.subr.bf16.mxu0 0
    %360 = vmatpush1.bf16.msra.mxu0 %v342
    %361 = vmatprep.subr.bf16.mxu0 0
    %362 = vmatpush1.bf16.msra.mxu0 %v343
    %363 = vmatprep.subr.bf16.mxu0 0
    %364 = vmatpush1.bf16.msra.mxu0 %v344
    %365 = vmatprep.subr.bf16.mxu0 0
    %366 = vmatpush1.bf16.msra.mxu0 %v345
    %367 = vmatprep.subr.bf16.mxu0 0
    %368 = vmatpush1.bf16.msra.mxu0 %v346
    %369 = vmatprep.subr.bf16.mxu0 0
    %370 = vmatpush1.bf16.msra.mxu0 %v347
    %371 = vmatprep.subr.bf16.mxu0 0
    %372 = vmatpush1.bf16.msra.mxu0 %v348
    %373 = vmatprep.subr.bf16.mxu0 0
    %374 = vmatpush1.bf16.msra.mxu0 0
    %375 = vmatprep.subr.bf16.mxu0 0
    %376 = vmatpush1.bf16.msra.mxu0 0
    %377 = vmatprep.subr.bf16.mxu0 0
    %378 = vmatpush1.bf16.msra.mxu0 0
    %379 = vmatprep.subr.bf16.mxu0 0
    %380 = vmatpush1.bf16.msra.mxu0 0
    %381 = vmatprep.subr.bf16.mxu0 0
    %382 = vmatpush1.bf16.msra.mxu0 0
    %383 = vmatprep.subr.bf16.mxu0 0
    %384 = vmatpush1.bf16.msra.mxu0 0
    %385 = vmatprep.subr.bf16.mxu0 0
    %386 = vmatpush1.bf16.msra.mxu0 0
    %387 = vmatprep.subr.bf16.mxu0 0
    %388 = vmatpush1.bf16.msra.mxu0 0
    %389 = vmatprep.mubr.bf16.mxu0 0
    %390 = vmatmul.mubr.bf16.gmra.mrb[0].mxu0 %v100
    %v391 = vpop.f32.mrb[0].mxu0
    %v392 = vadd.f32 %v247, %v391
    %v393 = vpop.f32.mrb[0].mxu0
    %v394 = vpop.f32.mrb[0].mxu0
    %v395 = vadd.f32 %v250, %v394
    %v396 = vpop.f32.mrb[0].mxu0
    %397 = vmatprep.mubr.bf16.mxu0 0
    %398 = vmatmul.mubr.bf16.gmra.mrb[0].mxu0 %v101
    %v399 = vpop.f32.mrb[0].mxu0
    %v400 = vadd.f32 %v255, %v399
    %v401 = vpop.f32.mrb[0].mxu0
    %v402 = vpop.f32.mrb[0].mxu0
    %v403 = vadd.f32 %v258, %v402
    %v404 = vpop.f32.mrb[0].mxu0
    %405 = vmatprep.mubr.bf16.mxu0 0
    %406 = vmatmul.mubr.bf16.gmra.mrb[0].mxu0 %v102
    %v407 = vpop.f32.mrb[0].mxu0
    %v408 = vadd.f32 %v263, %v407
    %v409 = vpop.f32.mrb[0].mxu0
    %v410 = vpop.f32.mrb[0].mxu0
    %v411 = vadd.f32 %v266, %v410
    %v412 = vpop.f32.mrb[0].mxu0
    %413 = vmatprep.mubr.bf16.mxu0 0
    %414 = vmatmul.mubr.bf16.gmra.mrb[0].mxu0 %v103
    %v415 = vpop.f32.mrb[0].mxu0
    %v416 = vadd.f32 %v271, %v415
    %v417 = vpop.f32.mrb[0].mxu0
    %v418 = vpop.f32.mrb[0].mxu0
    %v419 = vadd.f32 %v274, %v418
    %v420 = vpop.f32.mrb[0].mxu0
    %421 = vmatprep.mubr.bf16.mxu0 0
    %422 = vmatmul.mubr.bf16.gmra.mrb[0].mxu0 %v104
    %v423 = vpop.f32.mrb[0].mxu0
    %v424 = vadd.f32 %v279, %v423
    %v425 = vpop.f32.mrb[0].mxu0
    %v426 = vpop.f32.mrb[0].mxu0
    %v427 = vadd.f32 %v282, %v426
    %v428 = vpop.f32.mrb[0].mxu0
    %429 = vmatprep.mubr.bf16.mxu0 0
    %430 = vmatmul.mubr.bf16.gmra.mrb[0].mxu0 %v105
    %v431 = vpop.f32.mrb[0].mxu0
    %v432 = vadd.f32 %v287, %v431
    %v433 = vpop.f32.mrb[0].mxu0
    %v434 = vpop.f32.mrb[0].mxu0
    %v435 = vadd.f32 %v290, %v434
    %v436 = vpop.f32.mrb[0].mxu0
    %437 = vmatprep.mubr.bf16.mxu0 0
    %438 = vmatmul.mubr.bf16.gmra.mrb[0].mxu0 %v106
    %v439 = vpop.f32.mrb[0].mxu0
    %v440 = vadd.f32 %v295, %v439
    %v441 = vpop.f32.mrb[0].mxu0
    %v442 = vpop.f32.mrb[0].mxu0
    %v443 = vadd.f32 %v298, %v442
    %v444 = vpop.f32.mrb[0].mxu0
    %445 = vmatprep.mubr.bf16.mxu0 0
    %446 = vmatmul.mubr.bf16.gmra.mrb[0].mxu0 %v107
    %v447 = vpop.f32.mrb[0].mxu0
    %v448 = vadd.f32 %v303, %v447
    %v449 = vpop.f32.mrb[0].mxu0
    %v450 = vpop.f32.mrb[0].mxu0
    %v451 = vadd.f32 %v306, %v450
    %v452 = vpop.f32.mrb[0].mxu0
    %453 = vdwg.mxu0
    %v454 = vld [vmem:[%s4] sm:$0x1]
    %v456 = vlaneseq
    %v457 = vshrl.u32 %v456, 7
    %v458 = vsub.s32 0, %v457
    %v459 = vrot.slane %v454, %v458
    %v461 = vadd.f32 %v392, %v459
    %v462 = vadd.f32 %v395, %v459
    %v463 = vadd.f32 %v400, %v459
    %v464 = vadd.f32 %v403, %v459
    %v465 = vadd.f32 %v408, %v459
    %v466 = vadd.f32 %v411, %v459
    %v467 = vadd.f32 %v416, %v459
    %v468 = vadd.f32 %v419, %v459
    %v469 = vadd.f32 %v424, %v459
    %v470 = vadd.f32 %v427, %v459
    %v471 = vadd.f32 %v432, %v459
    %v472 = vadd.f32 %v435, %v459
    %v473 = vadd.f32 %v440, %v459
    %v474 = vadd.f32 %v443, %v459
    %v475 = vadd.f32 %v448, %v459
    %v476 = vadd.f32 %v451, %v459
    %v477 = vmax.f32 %v461, 0.0
    %v478 = vmax.f32 %v462, 0.0
    %v479 = vmax.f32 %v463, 0.0
    %v480 = vmax.f32 %v464, 0.0
    %v481 = vmax.f32 %v465, 0.0
    %v482 = vmax.f32 %v466, 0.0
    %v483 = vmax.f32 %v467, 0.0
    %v484 = vmax.f32 %v468, 0.0
    %v485 = vmax.f32 %v469, 0.0
    %v486 = vmax.f32 %v470, 0.0
    %v487 = vmax.f32 %v471, 0.0
    %v488 = vmax.f32 %v472, 0.0
    %v489 = vmax.f32 %v473, 0.0
    %v490 = vmax.f32 %v474, 0.0
    %v491 = vmax.f32 %v475, 0.0
    %v492 = vmax.f32 %v476, 0.0
    %v493 = vld [vmem:[%s5] sm:$0x1]
    %v495 = vlaneseq
    %v496 = vshrl.u32 %v495, 7
    %v497 = vsub.s32 0, %v496
    %v498 = vrot.slane %v493, %v497
    %v500 = vmul.f32 %v477, %v498
    %v501 = vmul.f32 %v478, %v498
    %v502 = vmul.f32 %v479, %v498
    %v503 = vmul.f32 %v480, %v498
    %v504 = vmul.f32 %v481, %v498
    %v505 = vmul.f32 %v482, %v498
    %v506 = vmul.f32 %v483, %v498
    %v507 = vmul.f32 %v484, %v498
    %v508 = vmul.f32 %v485, %v498
    %v509 = vmul.f32 %v486, %v498
    %v510 = vmul.f32 %v487, %v498
    %v511 = vmul.f32 %v488, %v498
    %v512 = vmul.f32 %v489, %v498
    %v513 = vmul.f32 %v490, %v498
    %v514 = vmul.f32 %v491, %v498
    %v515 = vmul.f32 %v492, %v498
    %516 = vadd.xlane.f32.xlu0 %v500
    %v517 = vpop.xlane.xlu0 %516
    %518 = vadd.xlane.f32.xlu0 %v501
    %v519 = vpop.xlane.xlu0 %518
    %520 = vadd.xlane.f32.xlu0 %v502
    %v521 = vpop.xlane.xlu0 %520
    %522 = vadd.xlane.f32.xlu0 %v503
    %v523 = vpop.xlane.xlu0 %522
    %524 = vadd.xlane.f32.xlu0 %v504
    %v525 = vpop.xlane.xlu0 %524
    %526 = vadd.xlane.f32.xlu0 %v505
    %v527 = vpop.xlane.xlu0 %526
    %528 = vadd.xlane.f32.xlu0 %v506
    %v529 = vpop.xlane.xlu0 %528
    %530 = vadd.xlane.f32.xlu0 %v507
    %v531 = vpop.xlane.xlu0 %530
    %532 = vadd.xlane.f32.xlu0 %v508
    %v533 = vpop.xlane.xlu0 %532
    %534 = vadd.xlane.f32.xlu0 %v509
    %v535 = vpop.xlane.xlu0 %534
    %536 = vadd.xlane.f32.xlu0 %v510
    %v537 = vpop.xlane.xlu0 %536
    %538 = vadd.xlane.f32.xlu0 %v511
    %v539 = vpop.xlane.xlu0 %538
    %540 = vadd.xlane.f32.xlu0 %v512
    %v541 = vpop.xlane.xlu0 %540
    %542 = vadd.xlane.f32.xlu0 %v513
    %v543 = vpop.xlane.xlu0 %542
    %544 = vadd.xlane.f32.xlu0 %v514
    %v545 = vpop.xlane.xlu0 %544
    %546 = vadd.xlane.f32.xlu0 %v515
    %v547 = vpop.xlane.xlu0 %546
    %s548 = sld [smem:[#allocation2]]
    %v549 = vstv %s548
    %v550 = vadd.f32 %v517, %v549
    %v551 = vadd.f32 %v519, %v549
    %v552 = vadd.f32 %v521, %v549
    %v553 = vadd.f32 %v523, %v549
    %v554 = vadd.f32 %v525, %v549
    %v555 = vadd.f32 %v527, %v549
    %v556 = vadd.f32 %v529, %v549
    %v557 = vadd.f32 %v531, %v549
    %v558 = vadd.f32 %v533, %v549
    %v559 = vadd.f32 %v535, %v549
    %v560 = vadd.f32 %v537, %v549
    %v561 = vadd.f32 %v539, %v549
    %v562 = vadd.f32 %v541, %v549
    %v563 = vadd.f32 %v543, %v549
    %v564 = vadd.f32 %v545, %v549
    %v565 = vadd.f32 %v547, %v549
    %v582 = vlaneseq
    %v583 = vand.u32 %v582, 127
    %v584 = vlaneseq
    %v585 = vshrl.u32 %v584, 7
    %v586 = vsub.s32 %v583, %v585
    %v587 = vrot.slane %v550, %v586
    %v588 = vadd.s32 %v583, 4294967288
    %v589 = vlaneseq
    %v590 = vshrl.u32 %v589, 7
    %v591 = vsub.s32 %v588, %v590
    %v592 = vrot.slane %v551, %v591
    %vm593 = vcmask 130112
    %v594 = vsel %vm593, %v592, %v587
    %v595 = vadd.s32 %v583, 4294967280
    %v596 = vlaneseq
    %v597 = vshrl.u32 %v596, 7
    %v598 = vsub.s32 %v595, %v597
    %v599 = vrot.slane %v552, %v598
    %vm600 = vcmask 195712
    %v601 = vsel %vm600, %v599, %v594
    %v602 = vadd.s32 %v583, 4294967272
    %v603 = vlaneseq
    %v604 = vshrl.u32 %v603, 7
    %v605 = vsub.s32 %v602, %v604
    %v606 = vrot.slane %v553, %v605
    %vm607 = vcmask 261312
    %v608 = vsel %vm607, %v606, %v601
    %v609 = vadd.s32 %v583, 4294967264
    %v610 = vlaneseq
    %v611 = vshrl.u32 %v610, 7
    %v612 = vsub.s32 %v609, %v611
    %v613 = vrot.slane %v554, %v612
    %vm614 = vcmask 326912
    %v615 = vsel %vm614, %v613, %v608
    %v616 = vadd.s32 %v583, 4294967256
    %v617 = vlaneseq
    %v618 = vshrl.u32 %v617, 7
    %v619 = vsub.s32 %v616, %v618
    %v620 = vrot.slane %v555, %v619
    %vm621 = vcmask 392512
    %v622 = vsel %vm621, %v620, %v615
    %v623 = vadd.s32 %v583, 4294967248
    %v624 = vlaneseq
    %v625 = vshrl.u32 %v624, 7
    %v626 = vsub.s32 %v623, %v625
    %v627 = vrot.slane %v556, %v626
    %vm628 = vcmask 458112
    %v629 = vsel %vm628, %v627, %v622
    %v630 = vadd.s32 %v583, 4294967240
    %v631 = vlaneseq
    %v632 = vshrl.u32 %v631, 7
    %v633 = vsub.s32 %v630, %v632
    %v634 = vrot.slane %v557, %v633
    %vm635 = vcmask 523712
    %v636 = vsel %vm635, %v634, %v629
    %v637 = vadd.s32 %v583, 4294967232
    %v638 = vlaneseq
    %v639 = vshrl.u32 %v638, 7
    %v640 = vsub.s32 %v637, %v639
    %v641 = vrot.slane %v558, %v640
    %vm642 = vcmask 589312
    %v643 = vsel %vm642, %v641, %v636
    %v644 = vadd.s32 %v583, 4294967224
    %v645 = vlaneseq
    %v646 = vshrl.u32 %v645, 7
    %v647 = vsub.s32 %v644, %v646
    %v648 = vrot.slane %v559, %v647
    %vm649 = vcmask 654912
    %v650 = vsel %vm649, %v648, %v643
    %v651 = vadd.s32 %v583, 4294967216
    %v652 = vlaneseq
    %v653 = vshrl.u32 %v652, 7
    %v654 = vsub.s32 %v651, %v653
    %v655 = vrot.slane %v560, %v654
    %vm656 = vcmask 720512
    %v657 = vsel %vm656, %v655, %v650
    %v658 = vadd.s32 %v583, 4294967208
    %v659 = vlaneseq
    %v660 = vshrl.u32 %v659, 7
    %v661 = vsub.s32 %v658, %v660
    %v662 = vrot.slane %v561, %v661
    %vm663 = vcmask 786112
    %v664 = vsel %vm663, %v662, %v657
    %v665 = vadd.s32 %v583, 4294967200
    %v666 = vlaneseq
    %v667 = vshrl.u32 %v666, 7
    %v668 = vsub.s32 %v665, %v667
    %v669 = vrot.slane %v562, %v668
    %vm670 = vcmask 851712
    %v671 = vsel %vm670, %v669, %v664
    %v672 = vadd.s32 %v583, 4294967192
    %v673 = vlaneseq
    %v674 = vshrl.u32 %v673, 7
    %v675 = vsub.s32 %v672, %v674
    %v676 = vrot.slane %v563, %v675
    %vm677 = vcmask 917312
    %v678 = vsel %vm677, %v676, %v671
    %v679 = vadd.s32 %v583, 4294967184
    %v680 = vlaneseq
    %v681 = vshrl.u32 %v680, 7
    %v682 = vsub.s32 %v679, %v681
    %v683 = vrot.slane %v564, %v682
    %vm684 = vcmask 982912
    %v685 = vsel %vm684, %v683, %v678
    %v686 = vadd.s32 %v583, 4294967176
    %v687 = vlaneseq
    %v688 = vshrl.u32 %v687, 7
    %v689 = vsub.s32 %v686, %v688
    %v690 = vrot.slane %v565, %v689
    %vm691 = vcmask 1048512
    %v692 = vsel %vm691, %v690, %v685
    %694 = vst [vmem:[#allocation11] sm:$0x1] %v692
    // Predicated region
    $region46: #{tpu_custom_call.1} parent=1 // pred_check
      _
    $region47: #{tpu_custom_call.1} parent=1 // pred_check_branch
      %696 = sbr.rel (0) target = $region49
    $region48: #{tpu_custom_call.1} parent=1 // pred_region
      %s698 = ssub.s32 16, 16
      %699 = vsyncadd [#allocation5], %s698
      %s701 = sshll.u32 [#allocation11], 4
      %s702 = int_to_ptr.vmem [resolvable:$true] %s701
      %704 = dma.vmem_to_hbm [thread:$0]  %s702, 16, %s7, [#allocation5]
    $region49: #{tpu_custom_call.1} parent=1 // pred_fallthru
      _
    // Predicated region
    $region50: #{tpu_custom_call.1} parent=1 // pred_check
      _
    $region51: #{tpu_custom_call.1} parent=1 // pred_check_branch
      %706 = sbr.rel (0) target = $region53
    $region52: #{tpu_custom_call.1} parent=1 // pred_region
      %707 = dma.done [#allocation5], 16
    $region53: #{tpu_custom_call.1} parent=1 // pred_fallthru
      _
    %708 = vsyncpa [#allocation4], 1
    %709 = vsyncpa [#allocation7], 1
    %710 = vsyncpa [#allocation10], 1
    %711 = vsyncpa [#allocation5], 1

// kernel: tpu_custom_call.1
$region0: #{tpu_custom_call.1}
  #allocation0 [shape = 'u32[]', space=smem, size = 0x4, offset = 0x4, fixed_abs, tag = 'smem constant byte address 0x4 - core index']
  #allocation1 [shape = 'u32[144,128]{1,0:T(1,128)}', space=vmem, size = 0x12000, scoped, tag = 'internal scratch']
  #allocation2 [shape = 'f32[1,1]{1,0:T(1,128)S(6)}', space=smem, size = 0x200, scoped, tag = 'scoped memory for tpu_custom_call.1']
  %s0 = inlined_call_operand.hbm [shape: f32[128,128], index: 0, kind: input, shape index: {}]
  %s1 = inlined_call_operand.hbm [shape: f32[128,128], index: 1, kind: input, shape index: {}]
  %s2 = inlined_call_operand.hbm [shape: bf16[128,128], index: 2, kind: input, shape index: {}]
  %s3 = inlined_call_operand.hbm [shape: bf16[128,128], index: 3, kind: input, shape index: {}]
  %s4 = inlined_call_operand.vmem [shape: f32[1,128], index: 4, kind: input, shape index: {}]
  %s5 = inlined_call_operand.vmem [shape: f32[1,128], index: 5, kind: input, shape index: {}]
  %s6 = inlined_call_operand.<no memory space> [shape: f32[1,1], index: 6, kind: input, shape index: {}]
  %s7 = inlined_call_operand.hbm [shape: f32[1,128], index: 7, kind: output, shape index: {}]
  %s8 = sld [smem:[#allocation0]]
  $region54: #{tpu_custom_call.1} parent=0
    _
  %s10 = ssub.s32 1, %s8
  %s11 = scalar_select 0, %s10, %s8
  %12 = sst [smem:[#allocation2]] %s6
  $region1: #{tpu_custom_call.1} parent=0
    #allocation3 [shape = 'u8[65536]{0}', space=vmem, size = 0x10000, scoped, tag = 'input window, operand 0, single buffered']
    #allocation4 [shape = 's32[1]{0}', space=sflag, size = 0x4, scoped, tag = 'scoped memory for tpu_custom_call.1']
    #allocation5 [shape = 's32[1]{0}', space=sflag, size = 0x4, scoped, tag = 'scoped memory for tpu_custom_call.1']
    #allocation6 [shape = 'u8[65536]{0}', space=vmem, size = 0x10000, scoped, tag = 'input window, operand 1, single buffered']
    #allocation7 [shape = 's32[1]{0}', space=sflag, size = 0x4, scoped, tag = 'scoped memory for tpu_custom_call.1']
    #allocation8 [shape = 'u8[32768]{0}', space=vmem, size = 0x8000, scoped, tag = 'input window, operand 2, single buffered']
    #allocation9 [shape = 'u8[32768]{0}', space=vmem, size = 0x8000, scoped, tag = 'input window, operand 3, single buffered']
    #allocation10 [shape = 's32[1]{0}', space=sflag, size = 0x4, scoped, tag = 'scoped memory for tpu_custom_call.1']
    #allocation11 [shape = 'u8[512]{0}', space=vmem, size = 0x400, scoped, tag = 'output window, operand 0, single buffered']
    %13 = vsyncpa [#allocation4], 0
    %14 = vsyncpa [#allocation7], 0
    %15 = vsyncpa [#allocation10], 0
    %16 = vsyncpa [#allocation5], 0
    // Predicated region
    $region2: #{tpu_custom_call.1} parent=1 // pred_check
      _
    $region3: #{tpu_custom_call.1} parent=1 // pred_check_branch
      %18 = sbr.rel (0) target = $region5
    $region4: #{tpu_custom_call.1} parent=1 // pred_region
      %s20 = ssub.s32 2048, 2048
      %21 = vsyncadd [#allocation4], %s20
      %s22 = sshll.u32 [#allocation3], 4
      %s23 = int_to_ptr.vmem [resolvable:$true] %s22
      %28 = dma.hbm_to_vmem [thread:$0]  %s0, 2048, %s23, [#allocation4], 128, 128, 8
    $region5: #{tpu_custom_call.1} parent=1 // pred_fallthru
      _
    // Predicated region
    $region6: #{tpu_custom_call.1} parent=1 // pred_check
      _
    $region7: #{tpu_custom_call.1} parent=1 // pred_check_branch
      %30 = sbr.rel (0) target = $region9
    $region8: #{tpu_custom_call.1} parent=1 // pred_region
      %s32 = ssub.s32 2048, 2048
      %33 = vsyncadd [#allocation7], %s32
      %s34 = sshll.u32 [#allocation6], 4
      %s35 = int_to_ptr.vmem [resolvable:$true] %s34
      %40 = dma.hbm_to_vmem [thread:$0]  %s1, 2048, %s35, [#allocation7], 128, 128, 8
    $region9: #{tpu_custom_call.1} parent=1 // pred_fallthru
      _
    // Predicated region
    $region10: #{tpu_custom_call.1} parent=1 // pred_check
      _
    $region11: #{tpu_custom_call.1} parent=1 // pred_check_branch
      %42 = sbr.rel (0) target = $region13
    $region12: #{tpu_custom_call.1} parent=1 // pred_region
      %s44 = ssub.s32 1024, 1024
      %45 = vsyncadd [#allocation7], %s44
      %s46 = sshll.u32 [#allocation8], 4
      %s47 = int_to_ptr.vmem [resolvable:$true] %s46
      %52 = dma.hbm_to_vmem [thread:$0]  %s2, 1024, %s47, [#allocation7], 64, 64, 4
    $region13: #{tpu_custom_call.1} parent=1 // pred_fallthru
      _
    // Predicated region
    $region14: #{tpu_custom_call.1} parent=1 // pred_check
      _
    $region15: #{tpu_custom_call.1} parent=1 // pred_check_branch
      %54 = sbr.rel (0) target = $region17
    $region16: #{tpu_custom_call.1} parent=1 // pred_region
      %s56 = ssub.s32 1024, 1024
      %57 = vsyncadd [#allocation10], %s56
      %s58 = sshll.u32 [#allocation9], 4
      %s59 = int_to_ptr.vmem [resolvable:$true] %s58
      %64 = dma.hbm_to_vmem [thread:$0]  %s3, 1024, %s59, [#allocation10], 64, 64, 4
    $region17: #{tpu_custom_call.1} parent=1 // pred_fallthru
      _
    // Predicated region
    $region18: #{tpu_custom_call.1} parent=1 // pred_check
      _
    $region19: #{tpu_custom_call.1} parent=1 // pred_check_branch
      %66 = sbr.rel (0) target = $region21
    $region20: #{tpu_custom_call.1} parent=1 // pred_region
      _
    $region21: #{tpu_custom_call.1} parent=1 // pred_fallthru
      _
    // Predicated region
    $region22: #{tpu_custom_call.1} parent=1 // pred_check
      _
    $region23: #{tpu_custom_call.1} parent=1 // pred_check_branch
      %68 = sbr.rel (0) target = $region25
    $region24: #{tpu_custom_call.1} parent=1 // pred_region
      _
    $region25: #{tpu_custom_call.1} parent=1 // pred_fallthru
      _
    // Predicated region
    $region26: #{tpu_custom_call.1} parent=1 // pred_check
      _
    $region27: #{tpu_custom_call.1} parent=1 // pred_check_branch
      %70 = sbr.rel (0) target = $region29
    $region28: #{tpu_custom_call.1} parent=1 // pred_region
      _
    $region29: #{tpu_custom_call.1} parent=1 // pred_fallthru
      _
    // Predicated region
    $region30: #{tpu_custom_call.1} parent=1 // pred_check
      _
    $region31: #{tpu_custom_call.1} parent=1 // pred_check_branch
      %72 = sbr.rel (0) target = $region33
    $region32: #{tpu_custom_call.1} parent=1 // pred_region
      %73 = dma.done [#allocation4], 2048
    $region33: #{tpu_custom_call.1} parent=1 // pred_fallthru
      _
    // Predicated region
    $region34: #{tpu_custom_call.1} parent=1 // pred_check
      _
    $region35: #{tpu_custom_call.1} parent=1 // pred_check_branch
      %75 = sbr.rel (0) target = $region37
    $region36: #{tpu_custom_call.1} parent=1 // pred_region
      %76 = dma.done [#allocation7], 2048
    $region37: #{tpu_custom_call.1} parent=1 // pred_fallthru
      _
    // Predicated region
    $region38: #{tpu_custom_call.1} parent=1 // pred_check
      _
    $region39: #{tpu_custom_call.1} parent=1 // pred_check_branch
      %78 = sbr.rel (0) target = $region41
    $region40: #{tpu_custom_call.1} parent=1 // pred_region
      %79 = dma.done [#allocation7], 1024
    $region41: #{tpu_custom_call.1} parent=1 // pred_fallthru
      _
    // Predicated region
    $region42: #{tpu_custom_call.1} parent=1 // pred_check
      _
    $region43: #{tpu_custom_call.1} parent=1 // pred_check_branch
      %81 = sbr.rel (0) target = $region45
    $region44: #{tpu_custom_call.1} parent=1 // pred_region
      %82 = dma.done [#allocation10], 1024
    $region45: #{tpu_custom_call.1} parent=1 // pred_fallthru
      _
    %v84 = vld [vmem:[#allocation3] sm:$0xff]
    %v85 = vld [vmem:[#allocation3 + $0x8] sm:$0xff]
    %v86 = vld [vmem:[#allocation3 + $0x10] sm:$0xff]
    %v87 = vld [vmem:[#allocation3 + $0x18] sm:$0xff]
    %v88 = vld [vmem:[#allocation3 + $0x20] sm:$0xff]
    %v89 = vld [vmem:[#allocation3 + $0x28] sm:$0xff]
    %v90 = vld [vmem:[#allocation3 + $0x30] sm:$0xff]
    %v91 = vld [vmem:[#allocation3 + $0x38] sm:$0xff]
    %v92 = vld [vmem:[#allocation3 + $0x40] sm:$0xff]
    %v93 = vld [vmem:[#allocation3 + $0x48] sm:$0xff]
    %v94 = vld [vmem:[#allocation3 + $0x50] sm:$0xff]
    %v95 = vld [vmem:[#allocation3 + $0x58] sm:$0xff]
    %v96 = vld [vmem:[#allocation3 + $0x60] sm:$0xff]
    %v97 = vld [vmem:[#allocation3 + $0x68] sm:$0xff]
    %v98 = vld [vmem:[#allocation3 + $0x70] sm:$0xff]
    %v99 = vld [vmem:[#allocation3 + $0x78] sm:$0xff]
    %v100 = vpack.c.bf16 %v85, %v84
    %v101 = vpack.c.bf16 %v87, %v86
    %v102 = vpack.c.bf16 %v89, %v88
    %v103 = vpack.c.bf16 %v91, %v90
    %v104 = vpack.c.bf16 %v93, %v92
    %v105 = vpack.c.bf16 %v95, %v94
    %v106 = vpack.c.bf16 %v97, %v96
    %v107 = vpack.c.bf16 %v99, %v98
    %v108 = vld [vmem:[#allocation6] sm:$0xff]
    %v109 = vld [vmem:[#allocation6 + $0x8] sm:$0xff]
    %v110 = vld [vmem:[#allocation6 + $0x10] sm:$0xff]
    %v111 = vld [vmem:[#allocation6 + $0x18] sm:$0xff]
    %v112 = vld [vmem:[#allocation6 + $0x20] sm:$0xff]
    %v113 = vld [vmem:[#allocation6 + $0x28] sm:$0xff]
    %v114 = vld [vmem:[#allocation6 + $0x30] sm:$0xff]
    %v115 = vld [vmem:[#allocation6 + $0x38] sm:$0xff]
    %v116 = vld [vmem:[#allocation6 + $0x40] sm:$0xff]
    %v117 = vld [vmem:[#allocation6 + $0x48] sm:$0xff]
    %v118 = vld [vmem:[#allocation6 + $0x50] sm:$0xff]
    %v119 = vld [vmem:[#allocation6 + $0x58] sm:$0xff]
    %v120 = vld [vmem:[#allocation6 + $0x60] sm:$0xff]
    %v121 = vld [vmem:[#allocation6 + $0x68] sm:$0xff]
    %v122 = vld [vmem:[#allocation6 + $0x70] sm:$0xff]
    %v123 = vld [vmem:[#allocation6 + $0x78] sm:$0xff]
    %v124 = vpack.c.bf16 %v109, %v108
    %v125 = vpack.c.bf16 %v111, %v110
    %v126 = vpack.c.bf16 %v113, %v112
    %v127 = vpack.c.bf16 %v115, %v114
    %v128 = vpack.c.bf16 %v117, %v116
    %v129 = vpack.c.bf16 %v119, %v118
    %v130 = vpack.c.bf16 %v121, %v120
    %v131 = vpack.c.bf16 %v123, %v122
    %v132 = vld [vmem:[#allocation8] sm:$0xf]
    %v133 = vld [vmem:[#allocation8 + $0x4] sm:$0xf]
    %v134 = vld [vmem:[#allocation8 + $0x8] sm:$0xf]
    %v135 = vld [vmem:[#allocation8 + $0xc] sm:$0xf]
    %v136 = vld [vmem:[#allocation8 + $0x10] sm:$0xf]
    %v137 = vld [vmem:[#allocation8 + $0x14] sm:$0xf]
    %v138 = vld [vmem:[#allocation8 + $0x18] sm:$0xf]
    %v139 = vld [vmem:[#allocation8 + $0x1c] sm:$0xf]
    %v140 = vld [vmem:[#allocation8 + $0x20] sm:$0xf]
    %v141 = vld [vmem:[#allocation8 + $0x24] sm:$0xf]
    %v142 = vld [vmem:[#allocation8 + $0x28] sm:$0xf]
    %v143 = vld [vmem:[#allocation8 + $0x2c] sm:$0xf]
    %v144 = vld [vmem:[#allocation8 + $0x30] sm:$0xf]
    %v145 = vld [vmem:[#allocation8 + $0x34] sm:$0xf]
    %v146 = vld [vmem:[#allocation8 + $0x38] sm:$0xf]
    %v147 = vld [vmem:[#allocation8 + $0x3c] sm:$0xf]
    %v148 = vld [vmem:[#allocation9] sm:$0xf]
    %v149 = vld [vmem:[#allocation9 + $0x4] sm:$0xf]
    %v150 = vld [vmem:[#allocation9 + $0x8] sm:$0xf]
    %v151 = vld [vmem:[#allocation9 + $0xc] sm:$0xf]
    %v152 = vld [vmem:[#allocation9 + $0x10] sm:$0xf]
    %v153 = vld [vmem:[#allocation9 + $0x14] sm:$0xf]
    %v154 = vld [vmem:[#allocation9 + $0x18] sm:$0xf]
    %v155 = vld [vmem:[#allocation9 + $0x1c] sm:$0xf]
    %v156 = vld [vmem:[#allocation9 + $0x20] sm:$0xf]
    %v157 = vld [vmem:[#allocation9 + $0x24] sm:$0xf]
    %v158 = vld [vmem:[#allocation9 + $0x28] sm:$0xf]
    %v159 = vld [vmem:[#allocation9 + $0x2c] sm:$0xf]
    %v160 = vld [vmem:[#allocation9 + $0x30] sm:$0xf]
    %v161 = vld [vmem:[#allocation9 + $0x34] sm:$0xf]
    %v162 = vld [vmem:[#allocation9 + $0x38] sm:$0xf]
    %v163 = vld [vmem:[#allocation9 + $0x3c] sm:$0xf]
    %v180 = vunpack.c.l.b16 %v148
    %v181 = vunpack.c.l.b16 %v149
    %v182 = vunpack.c.l.b16 %v150
    %v183 = vunpack.c.l.b16 %v151
    %v184 = vunpack.c.l.b16 %v152
    %v185 = vunpack.c.l.b16 %v153
    %v186 = vunpack.c.l.b16 %v154
    %v187 = vunpack.c.l.b16 %v155
    %v188 = vunpack.c.l.b16 %v156
    %v189 = vunpack.c.l.b16 %v157
    %v190 = vunpack.c.l.b16 %v158
    %v191 = vunpack.c.l.b16 %v159
    %v192 = vunpack.c.l.b16 %v160
    %v193 = vunpack.c.l.b16 %v161
    %v194 = vunpack.c.l.b16 %v162
    %v195 = vunpack.c.l.b16 %v163
    %v196 = vpack.c.b16 %v181, %v180
    %v197 = vpack.c.b16 %v183, %v182
    %v198 = vpack.c.b16 %v185, %v184
    %v199 = vpack.c.b16 %v187, %v186
    %v200 = vpack.c.b16 %v189, %v188
    %v201 = vpack.c.b16 %v191, %v190
    %v202 = vpack.c.b16 %v193, %v192
    %v203 = vpack.c.b16 %v195, %v194
    %212 = vmatprep.subr.bf16.mxu0 0
    %213 = vmatpush1.bf16.msra.mxu0 %v196
    %214 = vmatprep.subr.bf16.mxu0 0
    %215 = vmatpush1.bf16.msra.mxu0 %v197
    %216 = vmatprep.subr.bf16.mxu0 0
    %217 = vmatpush1.bf16.msra.mxu0 %v198
    %218 = vmatprep.subr.bf16.mxu0 0
    %219 = vmatpush1.bf16.msra.mxu0 %v199
    %220 = vmatprep.subr.bf16.mxu0 0
    %221 = vmatpush1.bf16.msra.mxu0 %v200
    %222 = vmatprep.subr.bf16.mxu0 0
    %223 = vmatpush1.bf16.msra.mxu0 %v201
    %224 = vmatprep.subr.bf16.mxu0 0
    %225 = vmatpush1.bf16.msra.mxu0 %v202
    %226 = vmatprep.subr.bf16.mxu0 0
    %227 = vmatpush1.bf16.msra.mxu0 %v203
    %228 = vmatprep.subr.bf16.mxu0 0
    %229 = vmatpush1.bf16.msra.mxu0 0
    %230 = vmatprep.subr.bf16.mxu0 0
    %231 = vmatpush1.bf16.msra.mxu0 0
    %232 = vmatprep.subr.bf16.mxu0 0
    %233 = vmatpush1.bf16.msra.mxu0 0
    %234 = vmatprep.subr.bf16.mxu0 0
    %235 = vmatpush1.bf16.msra.mxu0 0
    %236 = vmatprep.subr.bf16.mxu0 0
    %237 = vmatpush1.bf16.msra.mxu0 0
    %238 = vmatprep.subr.bf16.mxu0 0
    %239 = vmatpush1.bf16.msra.mxu0 0
    %240 = vmatprep.subr.bf16.mxu0 0
    %241 = vmatpush1.bf16.msra.mxu0 0
    %242 = vmatprep.subr.bf16.mxu0 0
    %243 = vmatpush1.bf16.msra.mxu0 0
    %244 = vmatprep.mubr.bf16.mxu0 0
    %245 = vmatmul.mubr.bf16.gmra.mrb[0].mxu0 %v124
    %v246 = vpop.f32.mrb[0].mxu0
    %v247 = vadd.f32 0.0, %v246
    %v248 = vpop.f32.mrb[0].mxu0
    %v249 = vpop.f32.mrb[0].mxu0
    %v250 = vadd.f32 0.0, %v249
    %v251 = vpop.f32.mrb[0].mxu0
    %252 = vmatprep.mubr.bf16.mxu0 0
    %253 = vmatmul.mubr.bf16.gmra.mrb[0].mxu0 %v125
    %v254 = vpop.f32.mrb[0].mxu0
    %v255 = vadd.f32 0.0, %v254
    %v256 = vpop.f32.mrb[0].mxu0
    %v257 = vpop.f32.mrb[0].mxu0
    %v258 = vadd.f32 0.0, %v257
    %v259 = vpop.f32.mrb[0].mxu0
    %260 = vmatprep.mubr.bf16.mxu0 0
    %261 = vmatmul.mubr.bf16.gmra.mrb[0].mxu0 %v126
    %v262 = vpop.f32.mrb[0].mxu0
    %v263 = vadd.f32 0.0, %v262
    %v264 = vpop.f32.mrb[0].mxu0
    %v265 = vpop.f32.mrb[0].mxu0
    %v266 = vadd.f32 0.0, %v265
    %v267 = vpop.f32.mrb[0].mxu0
    %268 = vmatprep.mubr.bf16.mxu0 0
    %269 = vmatmul.mubr.bf16.gmra.mrb[0].mxu0 %v127
    %v270 = vpop.f32.mrb[0].mxu0
    %v271 = vadd.f32 0.0, %v270
    %v272 = vpop.f32.mrb[0].mxu0
    %v273 = vpop.f32.mrb[0].mxu0
    %v274 = vadd.f32 0.0, %v273
    %v275 = vpop.f32.mrb[0].mxu0
    %276 = vmatprep.mubr.bf16.mxu0 0
    %277 = vmatmul.mubr.bf16.gmra.mrb[0].mxu0 %v128
    %v278 = vpop.f32.mrb[0].mxu0
    %v279 = vadd.f32 0.0, %v278
    %v280 = vpop.f32.mrb[0].mxu0
    %v281 = vpop.f32.mrb[0].mxu0
    %v282 = vadd.f32 0.0, %v281
    %v283 = vpop.f32.mrb[0].mxu0
    %284 = vmatprep.mubr.bf16.mxu0 0
    %285 = vmatmul.mubr.bf16.gmra.mrb[0].mxu0 %v129
    %v286 = vpop.f32.mrb[0].mxu0
    %v287 = vadd.f32 0.0, %v286
    %v288 = vpop.f32.mrb[0].mxu0
    %v289 = vpop.f32.mrb[0].mxu0
    %v290 = vadd.f32 0.0, %v289
    %v291 = vpop.f32.mrb[0].mxu0
    %292 = vmatprep.mubr.bf16.mxu0 0
    %293 = vmatmul.mubr.bf16.gmra.mrb[0].mxu0 %v130
    %v294 = vpop.f32.mrb[0].mxu0
    %v295 = vadd.f32 0.0, %v294
    %v296 = vpop.f32.mrb[0].mxu0
    %v297 = vpop.f32.mrb[0].mxu0
    %v298 = vadd.f32 0.0, %v297
    %v299 = vpop.f32.mrb[0].mxu0
    %300 = vmatprep.mubr.bf16.mxu0 0
    %301 = vmatmul.mubr.bf16.gmra.mrb[0].mxu0 %v131
    %v302 = vpop.f32.mrb[0].mxu0
    %v303 = vadd.f32 0.0, %v302
    %v304 = vpop.f32.mrb[0].mxu0
    %v305 = vpop.f32.mrb[0].mxu0
    %v306 = vadd.f32 0.0, %v305
    %v307 = vpop.f32.mrb[0].mxu0
    %308 = vdwg.mxu0
    %v325 = vunpack.c.l.b16 %v132
    %v326 = vunpack.c.l.b16 %v133
    %v327 = vunpack.c.l.b16 %v134
    %v328 = vunpack.c.l.b16 %v135
    %v329 = vunpack.c.l.b16 %v136
    %v330 = vunpack.c.l.b16 %v137
    %v331 = vunpack.c.l.b16 %v138
    %v332 = vunpack.c.l.b16 %v139
    %v333 = vunpack.c.l.b16 %v140
    %v334 = vunpack.c.l.b16 %v141
    %v335 = vunpack.c.l.b16 %v142
    %v336 = vunpack.c.l.b16 %v143
    %v337 = vunpack.c.l.b16 %v144
    %v338 = vunpack.c.l.b16 %v145
    %v339 = vunpack.c.l.b16 %v146
    %v340 = vunpack.c.l.b16 %v147
    %v341 = vpack.c.b16 %v326, %v325
    %v342 = vpack.c.b16 %v328, %v327
    %v343 = vpack.c.b16 %v330, %v329
    %v344 = vpack.c.b16 %v332, %v331
    %v345 = vpack.c.b16 %v334, %v333
    %v346 = vpack.c.b16 %v336, %v335
    %v347 = vpack.c.b16 %v338, %v337
    %v348 = vpack.c.b16 %v340, %v339
    %357 = vmatprep.subr.bf16.mxu0 0
    %358 = vmatpush1.bf16.msra.mxu0 %v341
    %359 = vmatprep.subr.bf16.mxu0 0
    %360 = vmatpush1.bf16.msra.mxu0 %v342
    %361 = vmatprep.subr.bf16.mxu0 0
    %362 = vmatpush1.bf16.msra.mxu0 %v343
    %363 = vmatprep.subr.bf16.mxu0 0
    %364 = vmatpush1.bf16.msra.mxu0 %v344
    %365 = vmatprep.subr.bf16.mxu0 0
    %366 = vmatpush1.bf16.msra.mxu0 %v345
    %367 = vmatprep.subr.bf16.mxu0 0
    %368 = vmatpush1.bf16.msra.mxu0 %v346
    %369 = vmatprep.subr.bf16.mxu0 0
    %370 = vmatpush1.bf16.msra.mxu0 %v347
    %371 = vmatprep.subr.bf16.mxu0 0
    %372 = vmatpush1.bf16.msra.mxu0 %v348
    %373 = vmatprep.subr.bf16.mxu0 0
    %374 = vmatpush1.bf16.msra.mxu0 0
    %375 = vmatprep.subr.bf16.mxu0 0
    %376 = vmatpush1.bf16.msra.mxu0 0
    %377 = vmatprep.subr.bf16.mxu0 0
    %378 = vmatpush1.bf16.msra.mxu0 0
    %379 = vmatprep.subr.bf16.mxu0 0
    %380 = vmatpush1.bf16.msra.mxu0 0
    %381 = vmatprep.subr.bf16.mxu0 0
    %382 = vmatpush1.bf16.msra.mxu0 0
    %383 = vmatprep.subr.bf16.mxu0 0
    %384 = vmatpush1.bf16.msra.mxu0 0
    %385 = vmatprep.subr.bf16.mxu0 0
    %386 = vmatpush1.bf16.msra.mxu0 0
    %387 = vmatprep.subr.bf16.mxu0 0
    %388 = vmatpush1.bf16.msra.mxu0 0
    %389 = vmatprep.mubr.bf16.mxu0 0
    %390 = vmatmul.mubr.bf16.gmra.mrb[0].mxu0 %v100
    %v391 = vpop.f32.mrb[0].mxu0
    %v392 = vadd.f32 %v247, %v391
    %v393 = vpop.f32.mrb[0].mxu0
    %v394 = vpop.f32.mrb[0].mxu0
    %v395 = vadd.f32 %v250, %v394
    %v396 = vpop.f32.mrb[0].mxu0
    %397 = vmatprep.mubr.bf16.mxu0 0
    %398 = vmatmul.mubr.bf16.gmra.mrb[0].mxu0 %v101
    %v399 = vpop.f32.mrb[0].mxu0
    %v400 = vadd.f32 %v255, %v399
    %v401 = vpop.f32.mrb[0].mxu0
    %v402 = vpop.f32.mrb[0].mxu0
    %v403 = vadd.f32 %v258, %v402
    %v404 = vpop.f32.mrb[0].mxu0
    %405 = vmatprep.mubr.bf16.mxu0 0
    %406 = vmatmul.mubr.bf16.gmra.mrb[0].mxu0 %v102
    %v407 = vpop.f32.mrb[0].mxu0
    %v408 = vadd.f32 %v263, %v407
    %v409 = vpop.f32.mrb[0].mxu0
    %v410 = vpop.f32.mrb[0].mxu0
    %v411 = vadd.f32 %v266, %v410
    %v412 = vpop.f32.mrb[0].mxu0
    %413 = vmatprep.mubr.bf16.mxu0 0
    %414 = vmatmul.mubr.bf16.gmra.mrb[0].mxu0 %v103
    %v415 = vpop.f32.mrb[0].mxu0
    %v416 = vadd.f32 %v271, %v415
    %v417 = vpop.f32.mrb[0].mxu0
    %v418 = vpop.f32.mrb[0].mxu0
    %v419 = vadd.f32 %v274, %v418
    %v420 = vpop.f32.mrb[0].mxu0
    %421 = vmatprep.mubr.bf16.mxu0 0
    %422 = vmatmul.mubr.bf16.gmra.mrb[0].mxu0 %v104
    %v423 = vpop.f32.mrb[0].mxu0
    %v424 = vadd.f32 %v279, %v423
    %v425 = vpop.f32.mrb[0].mxu0
    %v426 = vpop.f32.mrb[0].mxu0
    %v427 = vadd.f32 %v282, %v426
    %v428 = vpop.f32.mrb[0].mxu0
    %429 = vmatprep.mubr.bf16.mxu0 0
    %430 = vmatmul.mubr.bf16.gmra.mrb[0].mxu0 %v105
    %v431 = vpop.f32.mrb[0].mxu0
    %v432 = vadd.f32 %v287, %v431
    %v433 = vpop.f32.mrb[0].mxu0
    %v434 = vpop.f32.mrb[0].mxu0
    %v435 = vadd.f32 %v290, %v434
    %v436 = vpop.f32.mrb[0].mxu0
    %437 = vmatprep.mubr.bf16.mxu0 0
    %438 = vmatmul.mubr.bf16.gmra.mrb[0].mxu0 %v106
    %v439 = vpop.f32.mrb[0].mxu0
    %v440 = vadd.f32 %v295, %v439
    %v441 = vpop.f32.mrb[0].mxu0
    %v442 = vpop.f32.mrb[0].mxu0
    %v443 = vadd.f32 %v298, %v442
    %v444 = vpop.f32.mrb[0].mxu0
    %445 = vmatprep.mubr.bf16.mxu0 0
    %446 = vmatmul.mubr.bf16.gmra.mrb[0].mxu0 %v107
    %v447 = vpop.f32.mrb[0].mxu0
    %v448 = vadd.f32 %v303, %v447
    %v449 = vpop.f32.mrb[0].mxu0
    %v450 = vpop.f32.mrb[0].mxu0
    %v451 = vadd.f32 %v306, %v450
    %v452 = vpop.f32.mrb[0].mxu0
    %453 = vdwg.mxu0
    %v454 = vld [vmem:[%s4] sm:$0x1]
    %v456 = vlaneseq
    %v457 = vshrl.u32 %v456, 7
    %v458 = vsub.s32 0, %v457
    %v459 = vrot.slane %v454, %v458
    %v461 = vadd.f32 %v392, %v459
    %v462 = vadd.f32 %v395, %v459
    %v463 = vadd.f32 %v400, %v459
    %v464 = vadd.f32 %v403, %v459
    %v465 = vadd.f32 %v408, %v459
    %v466 = vadd.f32 %v411, %v459
    %v467 = vadd.f32 %v416, %v459
    %v468 = vadd.f32 %v419, %v459
    %v469 = vadd.f32 %v424, %v459
    %v470 = vadd.f32 %v427, %v459
    %v471 = vadd.f32 %v432, %v459
    %v472 = vadd.f32 %v435, %v459
    %v473 = vadd.f32 %v440, %v459
    %v474 = vadd.f32 %v443, %v459
    %v475 = vadd.f32 %v448, %v459
    %v476 = vadd.f32 %v451, %v459
    %v477 = vmax.f32 %v461, 0.0
    %v478 = vmax.f32 %v462, 0.0
    %v479 = vmax.f32 %v463, 0.0
    %v480 = vmax.f32 %v464, 0.0
    %v481 = vmax.f32 %v465, 0.0
    %v482 = vmax.f32 %v466, 0.0
    %v483 = vmax.f32 %v467, 0.0
    %v484 = vmax.f32 %v468, 0.0
    %v485 = vmax.f32 %v469, 0.0
    %v486 = vmax.f32 %v470, 0.0
    %v487 = vmax.f32 %v471, 0.0
    %v488 = vmax.f32 %v472, 0.0
    %v489 = vmax.f32 %v473, 0.0
    %v490 = vmax.f32 %v474, 0.0
    %v491 = vmax.f32 %v475, 0.0
    %v492 = vmax.f32 %v476, 0.0
    %v493 = vld [vmem:[%s5] sm:$0x1]
    %v495 = vlaneseq
    %v496 = vshrl.u32 %v495, 7
    %v497 = vsub.s32 0, %v496
    %v498 = vrot.slane %v493, %v497
    %v500 = vmul.f32 %v477, %v498
    %v501 = vmul.f32 %v478, %v498
    %v502 = vmul.f32 %v479, %v498
    %v503 = vmul.f32 %v480, %v498
    %v504 = vmul.f32 %v481, %v498
    %v505 = vmul.f32 %v482, %v498
    %v506 = vmul.f32 %v483, %v498
    %v507 = vmul.f32 %v484, %v498
    %v508 = vmul.f32 %v485, %v498
    %v509 = vmul.f32 %v486, %v498
    %v510 = vmul.f32 %v487, %v498
    %v511 = vmul.f32 %v488, %v498
    %v512 = vmul.f32 %v489, %v498
    %v513 = vmul.f32 %v490, %v498
    %v514 = vmul.f32 %v491, %v498
    %v515 = vmul.f32 %v492, %v498
    %516 = vadd.xlane.f32.xlu0 %v500
    %v517 = vpop.xlane.xlu0 %516
    %518 = vadd.xlane.f32.xlu0 %v501
    %v519 = vpop.xlane.xlu0 %518
    %520 = vadd.xlane.f32.xlu0 %v502
    %v521 = vpop.xlane.xlu0 %520
    %522 = vadd.xlane.f32.xlu0 %v503
    %v523 = vpop.xlane.xlu0 %522
    %524 = vadd.xlane.f32.xlu0 %v504
    %v525 = vpop.xlane.xlu0 %524
    %526 = vadd.xlane.f32.xlu0 %v505
    %v527 = vpop.xlane.xlu0 %526
    %528 = vadd.xlane.f32.xlu0 %v506
    %v529 = vpop.xlane.xlu0 %528
    %530 = vadd.xlane.f32.xlu0 %v507
    %v531 = vpop.xlane.xlu0 %530
    %532 = vadd.xlane.f32.xlu0 %v508
    %v533 = vpop.xlane.xlu0 %532
    %534 = vadd.xlane.f32.xlu0 %v509
    %v535 = vpop.xlane.xlu0 %534
    %536 = vadd.xlane.f32.xlu0 %v510
    %v537 = vpop.xlane.xlu0 %536
    %538 = vadd.xlane.f32.xlu0 %v511
    %v539 = vpop.xlane.xlu0 %538
    %540 = vadd.xlane.f32.xlu0 %v512
    %v541 = vpop.xlane.xlu0 %540
    %542 = vadd.xlane.f32.xlu0 %v513
    %v543 = vpop.xlane.xlu0 %542
    %544 = vadd.xlane.f32.xlu0 %v514
    %v545 = vpop.xlane.xlu0 %544
    %546 = vadd.xlane.f32.xlu0 %v515
    %v547 = vpop.xlane.xlu0 %546
    %s548 = sld [smem:[#allocation2]]
    %v549 = vstv %s548
    %v550 = vadd.f32 %v517, %v549
    %v551 = vadd.f32 %v519, %v549
    %v552 = vadd.f32 %v521, %v549
    %v553 = vadd.f32 %v523, %v549
    %v554 = vadd.f32 %v525, %v549
    %v555 = vadd.f32 %v527, %v549
    %v556 = vadd.f32 %v529, %v549
    %v557 = vadd.f32 %v531, %v549
    %v558 = vadd.f32 %v533, %v549
    %v559 = vadd.f32 %v535, %v549
    %v560 = vadd.f32 %v537, %v549
    %v561 = vadd.f32 %v539, %v549
    %v562 = vadd.f32 %v541, %v549
    %v563 = vadd.f32 %v543, %v549
    %v564 = vadd.f32 %v545, %v549
    %v565 = vadd.f32 %v547, %v549
    %v582 = vlaneseq
    %v583 = vand.u32 %v582, 127
    %v584 = vlaneseq
    %v585 = vshrl.u32 %v584, 7
    %v586 = vsub.s32 %v583, %v585
    %v587 = vrot.slane %v550, %v586
    %v588 = vadd.s32 %v583, 4294967288
    %v589 = vlaneseq
    %v590 = vshrl.u32 %v589, 7
    %v591 = vsub.s32 %v588, %v590
    %v592 = vrot.slane %v551, %v591
    %vm593 = vcmask 130112
    %v594 = vsel %vm593, %v592, %v587
    %v595 = vadd.s32 %v583, 4294967280
    %v596 = vlaneseq
    %v597 = vshrl.u32 %v596, 7
    %v598 = vsub.s32 %v595, %v597
    %v599 = vrot.slane %v552, %v598
    %vm600 = vcmask 195712
    %v601 = vsel %vm600, %v599, %v594
    %v602 = vadd.s32 %v583, 4294967272
    %v603 = vlaneseq
    %v604 = vshrl.u32 %v603, 7
    %v605 = vsub.s32 %v602, %v604
    %v606 = vrot.slane %v553, %v605
    %vm607 = vcmask 261312
    %v608 = vsel %vm607, %v606, %v601
    %v609 = vadd.s32 %v583, 4294967264
    %v610 = vlaneseq
    %v611 = vshrl.u32 %v610, 7
    %v612 = vsub.s32 %v609, %v611
    %v613 = vrot.slane %v554, %v612
    %vm614 = vcmask 326912
    %v615 = vsel %vm614, %v613, %v608
    %v616 = vadd.s32 %v583, 4294967256
    %v617 = vlaneseq
    %v618 = vshrl.u32 %v617, 7
    %v619 = vsub.s32 %v616, %v618
    %v620 = vrot.slane %v555, %v619
    %vm621 = vcmask 392512
    %v622 = vsel %vm621, %v620, %v615
    %v623 = vadd.s32 %v583, 4294967248
    %v624 = vlaneseq
    %v625 = vshrl.u32 %v624, 7
    %v626 = vsub.s32 %v623, %v625
    %v627 = vrot.slane %v556, %v626
    %vm628 = vcmask 458112
    %v629 = vsel %vm628, %v627, %v622
    %v630 = vadd.s32 %v583, 4294967240
    %v631 = vlaneseq
    %v632 = vshrl.u32 %v631, 7
    %v633 = vsub.s32 %v630, %v632
    %v634 = vrot.slane %v557, %v633
    %vm635 = vcmask 523712
    %v636 = vsel %vm635, %v634, %v629
    %v637 = vadd.s32 %v583, 4294967232
    %v638 = vlaneseq
    %v639 = vshrl.u32 %v638, 7
    %v640 = vsub.s32 %v637, %v639
    %v641 = vrot.slane %v558, %v640
    %vm642 = vcmask 589312
    %v643 = vsel %vm642, %v641, %v636
    %v644 = vadd.s32 %v583, 4294967224
    %v645 = vlaneseq
    %v646 = vshrl.u32 %v645, 7
    %v647 = vsub.s32 %v644, %v646
    %v648 = vrot.slane %v559, %v647
    %vm649 = vcmask 654912
    %v650 = vsel %vm649, %v648, %v643
    %v651 = vadd.s32 %v583, 4294967216
    %v652 = vlaneseq
    %v653 = vshrl.u32 %v652, 7
    %v654 = vsub.s32 %v651, %v653
    %v655 = vrot.slane %v560, %v654
    %vm656 = vcmask 720512
    %v657 = vsel %vm656, %v655, %v650
    %v658 = vadd.s32 %v583, 4294967208
    %v659 = vlaneseq
    %v660 = vshrl.u32 %v659, 7
    %v661 = vsub.s32 %v658, %v660
    %v662 = vrot.slane %v561, %v661
    %vm663 = vcmask 786112
    %v664 = vsel %vm663, %v662, %v657
    %v665 = vadd.s32 %v583, 4294967200
    %v666 = vlaneseq
    %v667 = vshrl.u32 %v666, 7
    %v668 = vsub.s32 %v665, %v667
    %v669 = vrot.slane %v562, %v668
    %vm670 = vcmask 851712
    %v671 = vsel %vm670, %v669, %v664
    %v672 = vadd.s32 %v583, 4294967192
    %v673 = vlaneseq
    %v674 = vshrl.u32 %v673, 7
    %v675 = vsub.s32 %v672, %v674
    %v676 = vrot.slane %v563, %v675
    %vm677 = vcmask 917312
    %v678 = vsel %vm677, %v676, %v671
    %v679 = vadd.s32 %v583, 4294967184
    %v680 = vlaneseq
    %v681 = vshrl.u32 %v680, 7
    %v682 = vsub.s32 %v679, %v681
    %v683 = vrot.slane %v564, %v682
    %vm684 = vcmask 982912
    %v685 = vsel %vm684, %v683, %v678
    %v686 = vadd.s32 %v583, 4294967176
    %v687 = vlaneseq
    %v688 = vshrl.u32 %v687, 7
    %v689 = vsub.s32 %v686, %v688
    %v690 = vrot.slane %v565, %v689
    %vm691 = vcmask 1048512
    %v692 = vsel %vm691, %v690, %v685
    %694 = vst [vmem:[#allocation11] sm:$0x1] %v692
    // Predicated region
    $region46: #{tpu_custom_call.1} parent=1 // pred_check
      _
    $region47: #{tpu_custom_call.1} parent=1 // pred_check_branch
      %696 = sbr.rel (0) target = $region49
    $region48: #{tpu_custom_call.1} parent=1 // pred_region
      %s698 = ssub.s32 16, 16
      %699 = vsyncadd [#allocation5], %s698
      %s701 = sshll.u32 [#allocation11], 4
      %s702 = int_to_ptr.vmem [resolvable:$true] %s701
      %704 = dma.vmem_to_hbm [thread:$0]  %s702, 16, %s7, [#allocation5]
    $region49: #{tpu_custom_call.1} parent=1 // pred_fallthru
      _
    // Predicated region
    $region50: #{tpu_custom_call.1} parent=1 // pred_check
      _
    $region51: #{tpu_custom_call.1} parent=1 // pred_check_branch
      %706 = sbr.rel (0) target = $region53
    $region52: #{tpu_custom_call.1} parent=1 // pred_region
      %707 = dma.done [#allocation5], 16
    $region53: #{tpu_custom_call.1} parent=1 // pred_fallthru
      _
    %708 = vsyncpa [#allocation4], 1
    %709 = vsyncpa [#allocation7], 1
    %710 = vsyncpa [#allocation10], 1
    %711 = vsyncpa [#allocation5], 1

</llo_original>
